<compile_context>
chip_gen: v6e
topology: v6e:2x2x1
jax: 0.10.0
libtpu: 0.0.40
codegen_flags: <defaults>
</compile_context>

<pallas_src>
import jax
import jax.numpy as jnp
from jax.experimental import pallas as pl
from jax.experimental.pallas import tpu as pltpu


def _leaky_relu(x, slope=0.2):
    return jnp.where(x > 0, x, slope * x)


def _make_kernel(chunk_p, n_chunks):
    """Build the fused kernel for a fixed patch-chunking schedule."""

    def kernel(x_ref,            # (BLOCK_B, P, K)      bf16 patch-flattened images
               ws_ref, bs_ref,   # (K, 512) bf16, (1, 512) f32    conv-stem stub
               wf_ref, bf_ref,   # (512, 768) bf16, (1, 768) f32  backbone.fc
               w1_ref, b1_ref,   # (768, 256) bf16, (1, 256) f32  head linear 1
               w2_ref, b2_ref,   # (256, 128) bf16, (1, 128) f32  head linear 2 (lane-padded)
               out_ref,          # (BLOCK_B, 128) f32   (only column 0 is meaningful)
               acc_ref):         # (BLOCK_B, 512) f32   pooled-sum scratch
        blk_b, P, K = x_ref.shape
        stem_dim = ws_ref.shape[1]

        def stem_chunk(start_p):
            # (blk_b, chunk_p, K) -> (blk_b*chunk_p, K): leading-dim collapse only.
            xc = x_ref[:, pl.ds(start_p, chunk_p), :].reshape(blk_b * chunk_p, K)
            s = jnp.dot(xc, ws_ref[...], preferred_element_type=jnp.float32)
            s = jnp.maximum(s + bs_ref[...], 0.0)
            return s.reshape(blk_b, chunk_p, stem_dim).sum(axis=1)

        if n_chunks == 1:
            pooled_sum = stem_chunk(0)
        else:
            # Chunked global-average-pool: never materialize the full
            # (blk_b*P, 512) f32 stem tensor; accumulate per chunk in VMEM.
            acc_ref[...] = jnp.zeros_like(acc_ref)

            def body(c, carry):
                acc_ref[...] += stem_chunk(pl.multiple_of(c * chunk_p, chunk_p))
                return carry

            jax.lax.fori_loop(0, n_chunks, body, 0, unroll=True)
            pooled_sum = acc_ref[...]

        pooled = (pooled_sum * (1.0 / P)).astype(jnp.bfloat16)

        # --- backbone.fc: Linear(512, 768) + LeakyReLU(0.2) ---
        feat = jnp.dot(pooled, wf_ref[...],
                       preferred_element_type=jnp.float32) + bf_ref[...]
        feat = _leaky_relu(feat)

        # --- MLP_Head: Linear(768,256)+LeakyReLU(0.2), Linear(256,1)+ReLU ---
        h = jnp.dot(feat.astype(jnp.bfloat16), w1_ref[...],
                    preferred_element_type=jnp.float32) + b1_ref[...]
        h = _leaky_relu(h)
        preds = jnp.dot(h.astype(jnp.bfloat16), w2_ref[...],
                        preferred_element_type=jnp.float32) + b2_ref[...]
        out_ref[...] = jnp.maximum(preds, 0.0).astype(out_ref.dtype)

    return kernel


def init_params(key, in_feat, stem_dim=512, vis_dim=768, head_hidden=256):
    ks = jax.random.split(key, 4)
    scale = 0.02
    params = dict(
        w_stem=scale * jax.random.normal(ks[0], (in_feat, stem_dim), jnp.float32),
        b_stem=jnp.zeros((1, stem_dim), jnp.float32),
        w_fc=scale * jax.random.normal(ks[1], (stem_dim, vis_dim), jnp.float32),
        b_fc=jnp.full((1, vis_dim), 0.01, jnp.float32),
        w_h1=scale * jax.random.normal(ks[2], (vis_dim, head_hidden), jnp.float32),
        b_h1=jnp.full((1, head_hidden), 0.01, jnp.float32),
        w_h2=scale * jax.random.normal(ks[3], (head_hidden, 1), jnp.float32),
        b_h2=jnp.full((1, 1), 0.01, jnp.float32),
    )
    return params


def _extract_patches(imgs, patch, dtype=jnp.float32):
    B, C, H, W = imgs.shape
    ph = pw = patch
    P = (H // ph) * (W // pw)
    K = C * ph * pw
    x = imgs.reshape(B, C, H // ph, ph, W // pw, pw)
    # transpose + reshape + cast fuse into one XLA pass over the activations.
    x = x.transpose(0, 2, 4, 1, 3, 5).reshape(B, P, K).astype(dtype)
    return x, P, K


def _pick_chunk_p(P, block_b, target_rows=2048):
    """Largest divisor of P (preferring multiples of 8, which keep the in-kernel
    reshape copy-free) such that each stem-matmul chunk has ~target_rows rows."""
    want = max(1, target_rows // max(block_b, 1))
    if want >= P:
        return P
    best = 1
    for c in range(1, want + 1):
        if P % c == 0:
            if c % 8 == 0:
                best = c
            elif best % 8 != 0:
                best = c
    return best


def _vmem_estimate(block_b, P, K, chunk_p, stem_dim, vis_dim, head_hidden, out_pad):
    weights = 2 * (K * stem_dim + stem_dim * vis_dim
                   + vis_dim * head_hidden + head_hidden * out_pad) * 2   # bf16, dbl-buf
    biases = 2 * (stem_dim + vis_dim + head_hidden + out_pad) * 4
    x_buf = 2 * block_b * P * K * 2                                       # bf16 input, dbl-buf
    acc = block_b * stem_dim * 4                                          # pooled-sum scratch
    chunk = 2 * block_b * chunk_p * stem_dim * 4                          # stem-chunk f32 (headroom)
    out = 2 * block_b * out_pad * 4
    return weights + biases + x_buf + acc + chunk + out


def iaanet_forward(imgs, params, patch=4, block_b=None):
    B = imgs.shape[0]
    # Patch-extract + bf16 cast in one fused pass; K left un-padded (no HBM inflation).
    x, P, K = _extract_patches(imgs, patch, dtype=jnp.bfloat16)

    stem_dim = params["w_stem"].shape[1]
    vis_dim = params["w_fc"].shape[1]
    head_hidden = params["w_h1"].shape[1]
    out_pad = 128  # lane-dense final output; column 0 holds the prediction

    # --- batch tile: as large as the VMEM budget allows (safe on v7x's 64 MiB) ---
    if block_b is None:
        block_b = min(512, 8 * pl.cdiv(B, 8))
    block_b = max(8, (block_b // 8) * 8)

    vmem_budget = 48 * 1024 * 1024
    while True:
        chunk_p = _pick_chunk_p(P, block_b)
        est = _vmem_estimate(block_b, P, K, chunk_p,
                             stem_dim, vis_dim, head_hidden, out_pad)
        if est <= vmem_budget or block_b <= 8:
            break
        block_b = max(8, ((block_b // 2) // 8) * 8)
    n_chunks = P // chunk_p

    B_pad = block_b * pl.cdiv(B, block_b)
    if B_pad > B:
        x = jnp.pad(x, ((0, B_pad - B), (0, 0), (0, 0)))

    # --- weights: bf16 MXU operands, f32 biases; only w_h2/b_h2 lane-padded (tiny) ---
    w_stem = params["w_stem"].astype(jnp.bfloat16)
    w_fc = params["w_fc"].astype(jnp.bfloat16)
    w_h1 = params["w_h1"].astype(jnp.bfloat16)
    w_h2 = jnp.pad(params["w_h2"],
                   ((0, 0), (0, out_pad - params["w_h2"].shape[1]))).astype(jnp.bfloat16)
    b_h2 = jnp.pad(params["b_h2"], ((0, 0), (0, out_pad - params["b_h2"].shape[1])))

    args = (x,
            w_stem, params["b_stem"],
            w_fc, params["b_fc"],
            w_h1, params["b_h1"],
            w_h2, b_h2)

    grid = (B_pad // block_b,)
    const2 = lambda i: (0, 0)
    in_specs = [
        pl.BlockSpec((block_b, P, K), lambda i: (i, 0, 0)),   # x (batch-tiled; last 2 dims full)
        pl.BlockSpec((K, stem_dim), const2),                  # w_stem (resident)
        pl.BlockSpec((1, stem_dim), const2),                  # b_stem
        pl.BlockSpec((stem_dim, vis_dim), const2),            # w_fc
        pl.BlockSpec((1, vis_dim), const2),                   # b_fc
        pl.BlockSpec((vis_dim, head_hidden), const2),         # w_h1
        pl.BlockSpec((1, head_hidden), const2),               # b_h1
        pl.BlockSpec((head_hidden, out_pad), const2),         # w_h2
        pl.BlockSpec((1, out_pad), const2),                   # b_h2
    ]
    out_specs = pl.BlockSpec((block_b, out_pad), lambda i: (i, 0))
    scratch_shapes = [pltpu.VMEM((block_b, stem_dim), jnp.float32)]

    # --- advisory cost model ---
    flops = int(2 * B_pad * P * K * stem_dim
                + 2 * B_pad * (stem_dim * vis_dim
                               + vis_dim * head_hidden
                               + head_hidden * out_pad))
    bytes_accessed = int(
        B_pad * P * K * 2                                        # input (bf16)
        + (K * stem_dim + stem_dim * vis_dim
           + vis_dim * head_hidden + head_hidden * out_pad) * 2  # weights (bf16)
        + (stem_dim + vis_dim + head_hidden + out_pad) * 4       # biases (f32)
        + B_pad * out_pad * 4)                                   # output (f32)
    cost = pl.CostEstimate(flops=flops, transcendentals=0,
                           bytes_accessed=bytes_accessed)

    vmem_limit = int(max(32 * 1024 * 1024, min(100 * 1024 * 1024, 2 * est)))

    out = pl.pallas_call(
        _make_kernel(chunk_p, n_chunks),
        out_shape=jax.ShapeDtypeStruct((B_pad, out_pad), jnp.float32),
        grid=grid,
        in_specs=in_specs,
        out_specs=out_specs,
        scratch_shapes=scratch_shapes,
        compiler_params=pltpu.CompilerParams(
            dimension_semantics=("parallel",),      # megacore sharding on v7x
            vmem_limit_bytes=vmem_limit),
        cost_estimate=cost,
    )(*args)

    return out[:B, :1]


def iaanet_reference(imgs, params, patch=4):
    """Pure-JAX reference mirroring the kernel numerics (bf16 operands, f32 math)."""
    x, P, K = _extract_patches(imgs, patch, dtype=jnp.float32)
    B = x.shape[0]

    def bdot(a, b):
        return jnp.dot(a.astype(jnp.bfloat16).astype(jnp.float32),
                       b.astype(jnp.bfloat16).astype(jnp.float32))

    stem = bdot(x.reshape(B * P, K), params["w_stem"]) + params["b_stem"]
    stem = jnp.maximum(stem, 0.0)
    pooled = stem.reshape(B, P, -1).mean(axis=1)
    feat = _leaky_relu(bdot(pooled, params["w_fc"]) + params["b_fc"])
    h = _leaky_relu(bdot(feat, params["w_h1"]) + params["b_h1"])
    preds = jnp.maximum(bdot(h, params["w_h2"]) + params["b_h2"], 0.0)
    return preds


if __name__ == "__main__":
    key = jax.random.PRNGKey(0)
    k_img, k_par = jax.random.split(key)

    B, C, H, W = 2, 3, 16, 16
    patch = 4
    in_feat = C * patch * patch   # 48

    imgs = jax.random.normal(k_img, (B, C, H, W), jnp.float32)
    params = init_params(k_par, in_feat)

    preds = iaanet_forward(imgs, params, patch=patch)
    preds = jax.block_until_ready(preds)

    ref = iaanet_reference(imgs, params, patch=patch)
    assert preds.shape == (B, 1)
    assert jnp.allclose(preds, ref, atol=1e-2, rtol=1e-2), (preds, ref)

    print("KERNEL_OK")
</pallas_src>

<mosaic_0001>
module attributes {stable_mosaic.version = 11 : i64} {
  func.func @kernel(%arg0: i32, %arg1: memref<8x16x48xbf16, #tpu.memory_space<vmem>>, %arg2: memref<48x512xbf16, #tpu.memory_space<vmem>>, %arg3: memref<1x512xf32, #tpu.memory_space<vmem>>, %arg4: memref<512x768xbf16, #tpu.memory_space<vmem>>, %arg5: memref<1x768xf32, #tpu.memory_space<vmem>>, %arg6: memref<768x256xbf16, #tpu.memory_space<vmem>>, %arg7: memref<1x256xf32, #tpu.memory_space<vmem>>, %arg8: memref<256x128xbf16, #tpu.memory_space<vmem>>, %arg9: memref<1x128xf32, #tpu.memory_space<vmem>>, %arg10: memref<8x128xf32, #tpu.memory_space<vmem>>, %arg11: memref<8x512xf32, #tpu.memory_space<vmem>>) attributes {dimension_semantics = [#tpu.dimension_semantics<parallel>], iteration_bounds = array<i64: 1>, scalar_prefetch = 0 : i64, scratch_operands = 1 : i64, tpu.core_type = #tpu.core_type<tc>, window_params = [{transform_indices = @transform_0, window_bounds = array<i64: 8, 16, 48>}, {pipeline_mode = #tpu.pipeline_mode<synchronous>, transform_indices = @transform_1, window_bounds = array<i64: 48, 512>}, {pipeline_mode = #tpu.pipeline_mode<synchronous>, transform_indices = @transform_2, window_bounds = array<i64: 1, 512>}, {pipeline_mode = #tpu.pipeline_mode<synchronous>, transform_indices = @transform_3, window_bounds = array<i64: 512, 768>}, {pipeline_mode = #tpu.pipeline_mode<synchronous>, transform_indices = @transform_4, window_bounds = array<i64: 1, 768>}, {pipeline_mode = #tpu.pipeline_mode<synchronous>, transform_indices = @transform_5, window_bounds = array<i64: 768, 256>}, {pipeline_mode = #tpu.pipeline_mode<synchronous>, transform_indices = @transform_6, window_bounds = array<i64: 1, 256>}, {pipeline_mode = #tpu.pipeline_mode<synchronous>, transform_indices = @transform_7, window_bounds = array<i64: 256, 128>}, {pipeline_mode = #tpu.pipeline_mode<synchronous>, transform_indices = @transform_8, window_bounds = array<i64: 1, 128>}, {transform_indices = @transform_9, window_bounds = array<i64: 8, 128>}]} {
    %c0 = arith.constant 0 : index
    %c0_0 = arith.constant 0 : index
    %c0_1 = arith.constant 0 : index
    %0 = vector.load %arg1[%c0, %c0_0, %c0_1] : memref<8x16x48xbf16, #tpu.memory_space<vmem>>, vector<8x16x48xbf16>
    %1 = vector.shape_cast %0 : vector<8x16x48xbf16> to vector<128x48xbf16>
    %c0_2 = arith.constant 0 : index
    %c0_3 = arith.constant 0 : index
    %2 = vector.load %arg2[%c0_2, %c0_3] : memref<48x512xbf16, #tpu.memory_space<vmem>>, vector<48x512xbf16>
    %cst = arith.constant dense<0.000000e+00> : vector<128x512xf32>
    %3 = tpu.matmul %1, %2, %cst {dimension_numbers = #tpu.dot_dimension_numbers<[1], [0], [0], [1], [0, 0, 1, 1], [], []>} : vector<128x48xbf16>, vector<48x512xbf16>, vector<128x512xf32> -> vector<128x512xf32>
    %c0_4 = arith.constant 0 : index
    %c0_5 = arith.constant 0 : index
    %4 = vector.load %arg3[%c0_4, %c0_5] : memref<1x512xf32, #tpu.memory_space<vmem>>, vector<1x512xf32>
    %5 = vector.broadcast %4 : vector<1x512xf32> to vector<128x512xf32>
    %6 = arith.addf %3, %5 : vector<128x512xf32>
    %cst_6 = arith.constant 0.000000e+00 : f32
    %7 = vector.broadcast %cst_6 : f32 to vector<128x512xf32>
    %8 = arith.maximumf %6, %7 : vector<128x512xf32>
    %9 = vector.shape_cast %8 : vector<128x512xf32> to vector<8x16x512xf32>
    %cst_7 = arith.constant dense<0.000000e+00> : vector<8x512xf32>
    %10 = vector.multi_reduction <add>, %9, %cst_7 [1] : vector<8x16x512xf32> to vector<8x512xf32>
    %cst_8 = arith.constant 6.250000e-02 : f32
    %11 = vector.broadcast %cst_8 : f32 to vector<8x512xf32>
    %12 = arith.mulf %10, %11 : vector<8x512xf32>
    %13 = arith.truncf %12 : vector<8x512xf32> to vector<8x512xbf16>
    %c0_9 = arith.constant 0 : index
    %c0_10 = arith.constant 0 : index
    %14 = vector.load %arg4[%c0_9, %c0_10] : memref<512x768xbf16, #tpu.memory_space<vmem>>, vector<512x768xbf16>
    %cst_11 = arith.constant dense<0.000000e+00> : vector<8x768xf32>
    %15 = tpu.matmul %13, %14, %cst_11 {dimension_numbers = #tpu.dot_dimension_numbers<[1], [0], [0], [1], [0, 0, 1, 1], [], []>} : vector<8x512xbf16>, vector<512x768xbf16>, vector<8x768xf32> -> vector<8x768xf32>
    %c0_12 = arith.constant 0 : index
    %c0_13 = arith.constant 0 : index
    %16 = vector.load %arg5[%c0_12, %c0_13] : memref<1x768xf32, #tpu.memory_space<vmem>>, vector<1x768xf32>
    %17 = vector.broadcast %16 : vector<1x768xf32> to vector<8x768xf32>
    %18 = arith.addf %15, %17 : vector<8x768xf32>
    %cst_14 = arith.constant 0.000000e+00 : f32
    %19 = vector.broadcast %cst_14 : f32 to vector<8x768xf32>
    %20 = arith.cmpf ogt, %18, %19 : vector<8x768xf32>
    %cst_15 = arith.constant 2.000000e-01 : f32
    %21 = vector.broadcast %cst_15 : f32 to vector<8x768xf32>
    %22 = arith.mulf %21, %18 : vector<8x768xf32>
    %23 = arith.select %20, %18, %22 : vector<8x768xi1>, vector<8x768xf32>
    %24 = arith.truncf %23 : vector<8x768xf32> to vector<8x768xbf16>
    %c0_16 = arith.constant 0 : index
    %c0_17 = arith.constant 0 : index
    %25 = vector.load %arg6[%c0_16, %c0_17] : memref<768x256xbf16, #tpu.memory_space<vmem>>, vector<768x256xbf16>
    %cst_18 = arith.constant dense<0.000000e+00> : vector<8x256xf32>
    %26 = tpu.matmul %24, %25, %cst_18 {dimension_numbers = #tpu.dot_dimension_numbers<[1], [0], [0], [1], [0, 0, 1, 1], [], []>} : vector<8x768xbf16>, vector<768x256xbf16>, vector<8x256xf32> -> vector<8x256xf32>
    %c0_19 = arith.constant 0 : index
    %c0_20 = arith.constant 0 : index
    %27 = vector.load %arg7[%c0_19, %c0_20] : memref<1x256xf32, #tpu.memory_space<vmem>>, vector<1x256xf32>
    %28 = vector.broadcast %27 : vector<1x256xf32> to vector<8x256xf32>
    %29 = arith.addf %26, %28 : vector<8x256xf32>
    %cst_21 = arith.constant 0.000000e+00 : f32
    %30 = vector.broadcast %cst_21 : f32 to vector<8x256xf32>
    %31 = arith.cmpf ogt, %29, %30 : vector<8x256xf32>
    %cst_22 = arith.constant 2.000000e-01 : f32
    %32 = vector.broadcast %cst_22 : f32 to vector<8x256xf32>
    %33 = arith.mulf %32, %29 : vector<8x256xf32>
    %34 = arith.select %31, %29, %33 : vector<8x256xi1>, vector<8x256xf32>
    %35 = arith.truncf %34 : vector<8x256xf32> to vector<8x256xbf16>
    %c0_23 = arith.constant 0 : index
    %c0_24 = arith.constant 0 : index
    %36 = vector.load %arg8[%c0_23, %c0_24] : memref<256x128xbf16, #tpu.memory_space<vmem>>, vector<256x128xbf16>
    %cst_25 = arith.constant dense<0.000000e+00> : vector<8x128xf32>
    %37 = tpu.matmul %35, %36, %cst_25 {dimension_numbers = #tpu.dot_dimension_numbers<[1], [0], [0], [1], [0, 0, 1, 1], [], []>} : vector<8x256xbf16>, vector<256x128xbf16>, vector<8x128xf32> -> vector<8x128xf32>
    %c0_26 = arith.constant 0 : index
    %c0_27 = arith.constant 0 : index
    %38 = vector.load %arg9[%c0_26, %c0_27] : memref<1x128xf32, #tpu.memory_space<vmem>>, vector<1x128xf32>
    %39 = vector.broadcast %38 : vector<1x128xf32> to vector<8x128xf32>
    %40 = arith.addf %37, %39 : vector<8x128xf32>
    %cst_28 = arith.constant 0.000000e+00 : f32
    %41 = vector.broadcast %cst_28 : f32 to vector<8x128xf32>
    %42 = arith.maximumf %40, %41 : vector<8x128xf32>
    %c0_29 = arith.constant 0 : index
    %c0_30 = arith.constant 0 : index
    %43 = vector.load %arg10[%c0_29, %c0_30] : memref<8x128xf32, #tpu.memory_space<vmem>>, vector<8x128xf32>
    tpu.vector_store %arg10[%c0_29, %c0_30], %42 {strides = array<i32>} : memref<8x128xf32, #tpu.memory_space<vmem>>, vector<8x128xf32>,
    return
  }
  func.func @transform_0(%arg0: i32) -> (i32, i32, i32) {
    %c0_i32 = arith.constant 0 : i32
    %c0_i32_0 = arith.constant 0 : i32
    %c0_i32_1 = arith.constant 0 : i32
    return %arg0, %c0_i32, %c0_i32_0 : i32, i32, i32
  }
  func.func @transform_1(%arg0: i32) -> (i32, i32) {
    %c0_i32 = arith.constant 0 : i32
    %c0_i32_0 = arith.constant 0 : i32
    %c0_i32_1 = arith.constant 0 : i32
    return %c0_i32, %c0_i32_0 : i32, i32
  }
  func.func @transform_2(%arg0: i32) -> (i32, i32) {
    %c0_i32 = arith.constant 0 : i32
    %c0_i32_0 = arith.constant 0 : i32
    %c0_i32_1 = arith.constant 0 : i32
    return %c0_i32, %c0_i32_0 : i32, i32
  }
  func.func @transform_3(%arg0: i32) -> (i32, i32) {
    %c0_i32 = arith.constant 0 : i32
    %c0_i32_0 = arith.constant 0 : i32
    %c0_i32_1 = arith.constant 0 : i32
    return %c0_i32, %c0_i32_0 : i32, i32
  }
  func.func @transform_4(%arg0: i32) -> (i32, i32) {
    %c0_i32 = arith.constant 0 : i32
    %c0_i32_0 = arith.constant 0 : i32
    %c0_i32_1 = arith.constant 0 : i32
    return %c0_i32, %c0_i32_0 : i32, i32
  }
  func.func @transform_5(%arg0: i32) -> (i32, i32) {
    %c0_i32 = arith.constant 0 : i32
    %c0_i32_0 = arith.constant 0 : i32
    %c0_i32_1 = arith.constant 0 : i32
    return %c0_i32, %c0_i32_0 : i32, i32
  }
  func.func @transform_6(%arg0: i32) -> (i32, i32) {
    %c0_i32 = arith.constant 0 : i32
    %c0_i32_0 = arith.constant 0 : i32
    %c0_i32_1 = arith.constant 0 : i32
    return %c0_i32, %c0_i32_0 : i32, i32
  }
  func.func @transform_7(%arg0: i32) -> (i32, i32) {
    %c0_i32 = arith.constant 0 : i32
    %c0_i32_0 = arith.constant 0 : i32
    %c0_i32_1 = arith.constant 0 : i32
    return %c0_i32, %c0_i32_0 : i32, i32
  }
  func.func @transform_8(%arg0: i32) -> (i32, i32) {
    %c0_i32 = arith.constant 0 : i32
    %c0_i32_0 = arith.constant 0 : i32
    %c0_i32_1 = arith.constant 0 : i32
    return %c0_i32, %c0_i32_0 : i32, i32
  }
  func.func @transform_9(%arg0: i32) -> (i32, i32) {
    %c0_i32 = arith.constant 0 : i32
    %c0_i32_0 = arith.constant 0 : i32
    return %arg0, %c0_i32 : i32, i32
  }
}

</mosaic_0001>

<llo_original>
// kernel: tpu_custom_call.1
$region0: #{tpu_custom_call.1}
  #allocation0 [shape = 'u32[]', space=smem, size = 0x4, offset = 0x4, fixed_abs, tag = 'smem constant byte address 0x4 - core index']
  #allocation1 [shape = 'u32[144,128]{1,0:T(1,128)}', space=vmem, size = 0x12000, scoped, tag = 'internal scratch']
  #allocation2 [shape = 'f32[8,512]{1,0:T(8,128)}', space=vmem, size = 0x4000, scoped, tag = 'scratch operand']
  %s0 = inlined_call_operand.hbm [shape: bf16[8,16,48], index: 0, kind: input, shape index: {}]
  %s1 = inlined_call_operand.hbm [shape: bf16[48,512], index: 1, kind: input, shape index: {}]
  %s2 = inlined_call_operand.hbm [shape: f32[1,512], index: 2, kind: input, shape index: {}]
  %s3 = inlined_call_operand.hbm [shape: bf16[512,768], index: 3, kind: input, shape index: {}]
  %s4 = inlined_call_operand.vmem [shape: f32[1,768], index: 4, kind: input, shape index: {}]
  %s5 = inlined_call_operand.hbm [shape: bf16[768,256], index: 5, kind: input, shape index: {}]
  %s6 = inlined_call_operand.vmem [shape: f32[1,256], index: 6, kind: input, shape index: {}]
  %s7 = inlined_call_operand.hbm [shape: bf16[256,128], index: 7, kind: input, shape index: {}]
  %s8 = inlined_call_operand.vmem [shape: f32[1,128], index: 8, kind: input, shape index: {}]
  %s9 = inlined_call_operand.hbm [shape: f32[8,128], index: 9, kind: output, shape index: {}]
  %s10 = sld [smem:[#allocation0]]
  $region70: #{tpu_custom_call.1} parent=0
    _
  %s12 = ssub.s32 1, %s10
  %s13 = scalar_select 0, %s12, %s10
  $region1: #{tpu_custom_call.1} parent=0
    #allocation3 [shape = 'u8[32768]{0}', space=vmem, size = 0x8000, scoped, tag = 'input window, operand 0, single buffered']
    #allocation4 [shape = 's32[1]{0}', space=sflag, size = 0x4, scoped, tag = 'scoped memory for tpu_custom_call.1']
    #allocation5 [shape = 's32[1]{0}', space=sflag, size = 0x4, scoped, tag = 'scoped memory for tpu_custom_call.1']
    #allocation6 [shape = 'u8[49152]{0}', space=vmem, size = 0xc000, scoped, tag = 'input window, operand 1, single buffered']
    #allocation7 [shape = 's32[1]{0}', space=sflag, size = 0x4, scoped, tag = 'scoped memory for tpu_custom_call.1']
    #allocation8 [shape = 'u8[2048]{0}', space=vmem, size = 0x800, scoped, tag = 'input window, operand 2, single buffered']
    #allocation9 [shape = 'u8[786432]{0}', space=vmem, size = 0xc0000, scoped, tag = 'input window, operand 3, single buffered']
    #allocation10 [shape = 's32[1]{0}', space=sflag, size = 0x4, scoped, tag = 'scoped memory for tpu_custom_call.1']
    #allocation11 [shape = 'u8[393216]{0}', space=vmem, size = 0x60000, scoped, tag = 'input window, operand 5, single buffered']
    #allocation12 [shape = 'u8[65536]{0}', space=vmem, size = 0x10000, scoped, tag = 'input window, operand 7, single buffered']
    #allocation13 [shape = 's32[1]{0}', space=sflag, size = 0x4, scoped, tag = 'scoped memory for tpu_custom_call.1']
    #allocation14 [shape = 'u8[4096]{0}', space=vmem, size = 0x1000, scoped, tag = 'output window, operand 0, single buffered']
    %14 = vsyncpa [#allocation4], 0
    %15 = vsyncpa [#allocation7], 0
    %16 = vsyncpa [#allocation10], 0
    %17 = vsyncpa [#allocation13], 0
    %18 = vsyncpa [#allocation5], 0
    // Predicated region
    $region2: #{tpu_custom_call.1} parent=1 // pred_check
      _
    $region3: #{tpu_custom_call.1} parent=1 // pred_check_branch
      %20 = sbr.rel (0) target = $region5
    $region4: #{tpu_custom_call.1} parent=1 // pred_region
      %s22 = ssub.s32 1024, 1024
      %23 = vsyncadd [#allocation4], %s22
      %s24 = sshll.u32 [#allocation3], 4
      %s25 = int_to_ptr.vmem [resolvable:$true] %s24
      %30 = dma.hbm_to_vmem [thread:$0]  %s0, 1024, %s25, [#allocation4], 64, 64, 4
    $region5: #{tpu_custom_call.1} parent=1 // pred_fallthru
      _
    // Predicated region
    $region6: #{tpu_custom_call.1} parent=1 // pred_check
      _
    $region7: #{tpu_custom_call.1} parent=1 // pred_check_branch
      %32 = sbr.rel (0) target = $region9
    $region8: #{tpu_custom_call.1} parent=1 // pred_region
      %s34 = ssub.s32 1536, 1536
      %35 = vsyncadd [#allocation7], %s34
      %s36 = sshll.u32 [#allocation6], 4
      %s37 = int_to_ptr.vmem [resolvable:$true] %s36
      %42 = dma.hbm_to_vmem [thread:$0]  %s1, 1536, %s37, [#allocation7], 256, 256, 16
    $region9: #{tpu_custom_call.1} parent=1 // pred_fallthru
      _
    // Predicated region
    $region10: #{tpu_custom_call.1} parent=1 // pred_check
      _
    $region11: #{tpu_custom_call.1} parent=1 // pred_check_branch
      %44 = sbr.rel (0) target = $region13
    $region12: #{tpu_custom_call.1} parent=1 // pred_region
      %s46 = ssub.s32 64, 64
      %47 = vsyncadd [#allocation7], %s46
      %s49 = sshll.u32 [#allocation8], 4
      %s50 = int_to_ptr.vmem [resolvable:$true] %s49
      %52 = dma.hbm_to_vmem [thread:$0]  %s2, 64, %s50, [#allocation7]
    $region13: #{tpu_custom_call.1} parent=1 // pred_fallthru
      _
    // Predicated region
    $region14: #{tpu_custom_call.1} parent=1 // pred_check
      _
    $region15: #{tpu_custom_call.1} parent=1 // pred_check_branch
      %54 = sbr.rel (0) target = $region17
    $region16: #{tpu_custom_call.1} parent=1 // pred_region
      %s56 = ssub.s32 24576, 24576
      %57 = vsyncadd [#allocation10], %s56
      %s58 = sshll.u32 [#allocation9], 4
      %s59 = int_to_ptr.vmem [resolvable:$true] %s58
      %64 = dma.hbm_to_vmem [thread:$0]  %s3, 24576, %s59, [#allocation10], 384, 384, 24
    $region17: #{tpu_custom_call.1} parent=1 // pred_fallthru
      _
    // Predicated region
    $region18: #{tpu_custom_call.1} parent=1 // pred_check
      _
    $region19: #{tpu_custom_call.1} parent=1 // pred_check_branch
      %66 = sbr.rel (0) target = $region21
    $region20: #{tpu_custom_call.1} parent=1 // pred_region
      _
    $region21: #{tpu_custom_call.1} parent=1 // pred_fallthru
      _
    // Predicated region
    $region22: #{tpu_custom_call.1} parent=1 // pred_check
      _
    $region23: #{tpu_custom_call.1} parent=1 // pred_check_branch
      %68 = sbr.rel (0) target = $region25
    $region24: #{tpu_custom_call.1} parent=1 // pred_region
      %s70 = ssub.s32 12288, 12288
      %71 = vsyncadd [#allocation10], %s70
      %s72 = sshll.u32 [#allocation11], 4
      %s73 = int_to_ptr.vmem [resolvable:$true] %s72
      %78 = dma.hbm_to_vmem [thread:$0]  %s5, 12288, %s73, [#allocation10], 128, 128, 8
    $region25: #{tpu_custom_call.1} parent=1 // pred_fallthru
      _
    // Predicated region
    $region26: #{tpu_custom_call.1} parent=1 // pred_check
      _
    $region27: #{tpu_custom_call.1} parent=1 // pred_check_branch
      %80 = sbr.rel (0) target = $region29
    $region28: #{tpu_custom_call.1} parent=1 // pred_region
      _
    $region29: #{tpu_custom_call.1} parent=1 // pred_fallthru
      _
    // Predicated region
    $region30: #{tpu_custom_call.1} parent=1 // pred_check
      _
    $region31: #{tpu_custom_call.1} parent=1 // pred_check_branch
      %82 = sbr.rel (0) target = $region33
    $region32: #{tpu_custom_call.1} parent=1 // pred_region
      %s84 = ssub.s32 2048, 2048
      %85 = vsyncadd [#allocation13], %s84
      %s86 = sshll.u32 [#allocation12], 4
      %s87 = int_to_ptr.vmem [resolvable:$true] %s86
      %92 = dma.hbm_to_vmem [thread:$0]  %s7, 2048, %s87, [#allocation13], 64, 64, 4
    $region33: #{tpu_custom_call.1} parent=1 // pred_fallthru
      _
    // Predicated region
    $region34: #{tpu_custom_call.1} parent=1 // pred_check
      _
    $region35: #{tpu_custom_call.1} parent=1 // pred_check_branch
      %94 = sbr.rel (0) target = $region37
    $region36: #{tpu_custom_call.1} parent=1 // pred_region
      _
    $region37: #{tpu_custom_call.1} parent=1 // pred_fallthru
      _
    // Predicated region
    $region38: #{tpu_custom_call.1} parent=1 // pred_check
      _
    $region39: #{tpu_custom_call.1} parent=1 // pred_check_branch
      %96 = sbr.rel (0) target = $region41
    $region40: #{tpu_custom_call.1} parent=1 // pred_region
      %97 = dma.done [#allocation4], 1024
    $region41: #{tpu_custom_call.1} parent=1 // pred_fallthru
      _
    // Predicated region
    $region42: #{tpu_custom_call.1} parent=1 // pred_check
      _
    $region43: #{tpu_custom_call.1} parent=1 // pred_check_branch
      %99 = sbr.rel (0) target = $region45
    $region44: #{tpu_custom_call.1} parent=1 // pred_region
      %100 = dma.done [#allocation7], 1536
    $region45: #{tpu_custom_call.1} parent=1 // pred_fallthru
      _
    // Predicated region
    $region46: #{tpu_custom_call.1} parent=1 // pred_check
      _
    $region47: #{tpu_custom_call.1} parent=1 // pred_check_branch
      %102 = sbr.rel (0) target = $region49
    $region48: #{tpu_custom_call.1} parent=1 // pred_region
      %103 = dma.done [#allocation7], 64
    $region49: #{tpu_custom_call.1} parent=1 // pred_fallthru
      _
    // Predicated region
    $region50: #{tpu_custom_call.1} parent=1 // pred_check
      _
    $region51: #{tpu_custom_call.1} parent=1 // pred_check_branch
      %105 = sbr.rel (0) target = $region53
    $region52: #{tpu_custom_call.1} parent=1 // pred_region
      %106 = dma.done [#allocation10], 24576
    $region53: #{tpu_custom_call.1} parent=1 // pred_fallthru
      _
    // Predicated region
    $region54: #{tpu_custom_call.1} parent=1 // pred_check
      _
    $region55: #{tpu_custom_call.1} parent=1 // pred_check_branch
      %108 = sbr.rel (0) target = $region57
    $region56: #{tpu_custom_call.1} parent=1 // pred_region
      %109 = dma.done [#allocation10], 12288
    $region57: #{tpu_custom_call.1} parent=1 // pred_fallthru
      _
    // Predicated region
    $region58: #{tpu_custom_call.1} parent=1 // pred_check
      _
    $region59: #{tpu_custom_call.1} parent=1 // pred_check_branch
      %111 = sbr.rel (0) target = $region61
    $region60: #{tpu_custom_call.1} parent=1 // pred_region
      %112 = dma.done [#allocation13], 2048
    $region61: #{tpu_custom_call.1} parent=1 // pred_fallthru
      _
    %v114 = vld [vmem:[#allocation3] sm:$0xf]
    %v115 = vld [vmem:[#allocation3 + $0x4] sm:$0xf]
    %v116 = vld [vmem:[#allocation3 + $0x8] sm:$0xf]
    %v117 = vld [vmem:[#allocation3 + $0xc] sm:$0xf]
    %v118 = vld [vmem:[#allocation3 + $0x10] sm:$0xf]
    %v119 = vld [vmem:[#allocation3 + $0x14] sm:$0xf]
    %v120 = vld [vmem:[#allocation3 + $0x18] sm:$0xf]
    %v121 = vld [vmem:[#allocation3 + $0x1c] sm:$0xf]
    %v122 = vld [vmem:[#allocation3 + $0x20] sm:$0xf]
    %v123 = vld [vmem:[#allocation3 + $0x24] sm:$0xf]
    %v124 = vld [vmem:[#allocation3 + $0x28] sm:$0xf]
    %v125 = vld [vmem:[#allocation3 + $0x2c] sm:$0xf]
    %v126 = vld [vmem:[#allocation3 + $0x30] sm:$0xf]
    %v127 = vld [vmem:[#allocation3 + $0x34] sm:$0xf]
    %v128 = vld [vmem:[#allocation3 + $0x38] sm:$0xf]
    %v129 = vld [vmem:[#allocation3 + $0x3c] sm:$0xf]
    %v130 = vld [vmem:[#allocation6] sm:$0xff]
    %v131 = vld [vmem:[#allocation6 + $0x8] sm:$0xff]
    %v132 = vld [vmem:[#allocation6 + $0x10] sm:$0xff]
    %v133 = vld [vmem:[#allocation6 + $0x18] sm:$0xff]
    %v134 = vld [vmem:[#allocation6 + $0x20] sm:$0xff]
    %v135 = vld [vmem:[#allocation6 + $0x28] sm:$0xff]
    %v136 = vld [vmem:[#allocation6 + $0x30] sm:$0xff]
    %v137 = vld [vmem:[#allocation6 + $0x38] sm:$0xff]
    %v138 = vld [vmem:[#allocation6 + $0x40] sm:$0xff]
    %v139 = vld [vmem:[#allocation6 + $0x48] sm:$0xff]
    %v140 = vld [vmem:[#allocation6 + $0x50] sm:$0xff]
    %v141 = vld [vmem:[#allocation6 + $0x58] sm:$0xff]
    %v142 = vld [vmem:[#allocation8] sm:$0xf]
    %v144 = vlaneseq
    %v145 = vshrl.u32 %v144, 7
    %v146 = vsub.s32 0, %v145
    %v147 = vrot.slane %v142, %v146
    %v148 = vlaneseq
    %v149 = vshrl.u32 %v148, 7
    %v150 = vsub.s32 1, %v149
    %v151 = vrot.slane %v142, %v150
    %v152 = vlaneseq
    %v153 = vshrl.u32 %v152, 7
    %v154 = vsub.s32 2, %v153
    %v155 = vrot.slane %v142, %v154
    %v156 = vlaneseq
    %v157 = vshrl.u32 %v156, 7
    %v158 = vsub.s32 3, %v157
    %v159 = vrot.slane %v142, %v158
    %v180 = vunpack.c.l.b16 %v114
    %v181 = vunpack.c.l.b16 %v115
    %v182 = vunpack.c.l.b16 %v116
    %v183 = vunpack.c.l.b16 %v117
    %v184 = vunpack.c.l.b16 %v118
    %v185 = vunpack.c.l.b16 %v119
    %v186 = vunpack.c.l.b16 %v120
    %v187 = vunpack.c.l.b16 %v121
    %v188 = vunpack.c.l.b16 %v122
    %v189 = vunpack.c.l.b16 %v123
    %v190 = vunpack.c.l.b16 %v124
    %v191 = vunpack.c.l.b16 %v125
    %v192 = vunpack.c.l.b16 %v126
    %v193 = vunpack.c.l.b16 %v127
    %v194 = vunpack.c.l.b16 %v128
    %v195 = vunpack.c.l.b16 %v129
    %v196 = vpack.c.b16 %v181, %v180
    %v197 = vpack.c.b16 %v183, %v182
    %v198 = vpack.c.b16 %v185, %v184
    %v199 = vpack.c.b16 %v187, %v186
    %v200 = vpack.c.b16 %v189, %v188
    %v201 = vpack.c.b16 %v191, %v190
    %v202 = vpack.c.b16 %v193, %v192
    %v203 = vpack.c.b16 %v195, %v194
    %v216 = vunpack.c.l.b16 %v130
    %v217 = vunpack.c.h.b16 %v130
    %v218 = vunpack.c.l.b16 %v131
    %v219 = vunpack.c.h.b16 %v131
    %v220 = vunpack.c.l.b16 %v132
    %v221 = vunpack.c.h.b16 %v132
    %v222 = vunpack.c.l.b16 %v133
    %v223 = vunpack.c.h.b16 %v133
    %v224 = vunpack.c.l.b16 %v134
    %v225 = vunpack.c.h.b16 %v134
    %v226 = vunpack.c.l.b16 %v135
    %v227 = vunpack.c.h.b16 %v135
    %v228 = vunpack.c.l.b16 %v136
    %v229 = vunpack.c.h.b16 %v136
    %v230 = vunpack.c.l.b16 %v137
    %v231 = vunpack.c.h.b16 %v137
    %v232 = vunpack.c.l.b16 %v138
    %v233 = vunpack.c.h.b16 %v138
    %v234 = vunpack.c.l.b16 %v139
    %v235 = vunpack.c.h.b16 %v139
    %v236 = vunpack.c.l.b16 %v140
    %v237 = vunpack.c.h.b16 %v140
    %v238 = vunpack.c.l.b16 %v141
    %v239 = vunpack.c.h.b16 %v141
    %v240 = vpack.c.b16 %v220, %v216
    %v241 = vpack.c.b16 %v221, %v217
    %v242 = vpack.c.b16 %v222, %v218
    %v243 = vpack.c.b16 %v223, %v219
    %v244 = vpack.c.b16 %v228, %v224
    %v245 = vpack.c.b16 %v229, %v225
    %v246 = vpack.c.b16 %v230, %v226
    %v247 = vpack.c.b16 %v231, %v227
    %v248 = vpack.c.b16 %v236, %v232
    %v249 = vpack.c.b16 %v237, %v233
    %v250 = vpack.c.b16 %v238, %v234
    %v251 = vpack.c.b16 %v239, %v235
    %vm264 = vcmask 392192
    %v266 = vsel %vm264, %v196, 0
    %v269 = vsel %vm264, %v197, 0
    %v272 = vsel %vm264, %v198, 0
    %v275 = vsel %vm264, %v199, 0
    %v278 = vsel %vm264, %v200, 0
    %v281 = vsel %vm264, %v201, 0
    %v284 = vsel %vm264, %v202, 0
    %v287 = vsel %vm264, %v203, 0
    %289 = vmatprep.subr.bf16.mxu0 0
    %290 = vmatpush1.bf16.msra.mxu0 0
    %291 = vmatprep.subr.bf16.mxu0 0
    %292 = vmatpush1.bf16.msra.mxu0 0
    %293 = vmatprep.subr.bf16.mxu0 0
    %294 = vmatpush1.bf16.msra.mxu0 0
    %295 = vmatprep.subr.bf16.mxu0 0
    %296 = vmatpush1.bf16.msra.mxu0 0
    %297 = vmatprep.subr.bf16.mxu0 0
    %298 = vmatpush1.bf16.msra.mxu0 0
    %299 = vmatprep.subr.bf16.mxu0 %v249
    %300 = vmatpush1.bf16.msra.mxu0 %v248
    %301 = vmatprep.subr.bf16.mxu0 %v245
    %302 = vmatpush1.bf16.msra.mxu0 %v244
    %303 = vmatprep.subr.bf16.mxu0 %v241
    %304 = vmatpush1.bf16.msra.mxu0 %v240
    %305 = vmatprep.subr.bf16.mxu0 0
    %306 = vmatpush2.bf16.msra.mxu0 0
    %307 = vmatprep.subr.bf16.mxu0 0
    %308 = vmatpush2.bf16.msra.mxu0 0
    %309 = vmatprep.subr.bf16.mxu0 0
    %310 = vmatpush2.bf16.msra.mxu0 0
    %311 = vmatprep.subr.bf16.mxu0 0
    %312 = vmatpush2.bf16.msra.mxu0 0
    %313 = vmatprep.subr.bf16.mxu0 0
    %314 = vmatpush2.bf16.msra.mxu0 0
    %315 = vmatprep.subr.bf16.mxu0 0
    %316 = vmatpush2.bf16.msra.mxu0 0
    %317 = vmatprep.subr.bf16.mxu0 0
    %318 = vmatpush2.bf16.msra.mxu0 0
    %319 = vmatprep.subr.bf16.mxu0 0
    %320 = vmatpush2.bf16.msra.mxu0 0
    %321 = vmatprep.mubr.bf16.mxu0 0
    %322 = vmatmul.mubr.bf16.gmra.mxu0 %v266
    %v323 = vpop.f32.mrf.mxu0
    %v324 = vadd.f32 %v147, %v323
    %v325 = vpop.f32.mrf.mxu0
    %v326 = vadd.f32 %v151, %v325
    %v327 = vpop.f32.mrf.mxu0
    %v328 = vadd.f32 %v147, %v327
    %v329 = vpop.f32.mrf.mxu0
    %v330 = vadd.f32 %v151, %v329
    %331 = vmatprep.mubr.bf16.mxu0 0
    %332 = vmatmul.mubr.bf16.gmra.mxu0 %v269
    %v333 = vpop.f32.mrf.mxu0
    %v334 = vadd.f32 %v147, %v333
    %v335 = vpop.f32.mrf.mxu0
    %v336 = vadd.f32 %v151, %v335
    %v337 = vpop.f32.mrf.mxu0
    %v338 = vadd.f32 %v147, %v337
    %v339 = vpop.f32.mrf.mxu0
    %v340 = vadd.f32 %v151, %v339
    %341 = vmatprep.mubr.bf16.mxu0 0
    %342 = vmatmul.mubr.bf16.gmra.mxu0 %v272
    %v343 = vpop.f32.mrf.mxu0
    %v344 = vadd.f32 %v147, %v343
    %v345 = vpop.f32.mrf.mxu0
    %v346 = vadd.f32 %v151, %v345
    %v347 = vpop.f32.mrf.mxu0
    %v348 = vadd.f32 %v147, %v347
    %v349 = vpop.f32.mrf.mxu0
    %v350 = vadd.f32 %v151, %v349
    %351 = vmatprep.mubr.bf16.mxu0 0
    %352 = vmatmul.mubr.bf16.gmra.mxu0 %v275
    %v353 = vpop.f32.mrf.mxu0
    %v354 = vadd.f32 %v147, %v353
    %v355 = vpop.f32.mrf.mxu0
    %v356 = vadd.f32 %v151, %v355
    %v357 = vpop.f32.mrf.mxu0
    %v358 = vadd.f32 %v147, %v357
    %v359 = vpop.f32.mrf.mxu0
    %v360 = vadd.f32 %v151, %v359
    %361 = vmatprep.mubr.bf16.mxu0 0
    %362 = vmatmul.mubr.bf16.gmra.mxu0 %v278
    %v363 = vpop.f32.mrf.mxu0
    %v364 = vadd.f32 %v147, %v363
    %v365 = vpop.f32.mrf.mxu0
    %v366 = vadd.f32 %v151, %v365
    %v367 = vpop.f32.mrf.mxu0
    %v368 = vadd.f32 %v147, %v367
    %v369 = vpop.f32.mrf.mxu0
    %v370 = vadd.f32 %v151, %v369
    %371 = vmatprep.mubr.bf16.mxu0 0
    %372 = vmatmul.mubr.bf16.gmra.mxu0 %v281
    %v373 = vpop.f32.mrf.mxu0
    %v374 = vadd.f32 %v147, %v373
    %v375 = vpop.f32.mrf.mxu0
    %v376 = vadd.f32 %v151, %v375
    %v377 = vpop.f32.mrf.mxu0
    %v378 = vadd.f32 %v147, %v377
    %v379 = vpop.f32.mrf.mxu0
    %v380 = vadd.f32 %v151, %v379
    %381 = vmatprep.mubr.bf16.mxu0 0
    %382 = vmatmul.mubr.bf16.gmra.mxu0 %v284
    %v383 = vpop.f32.mrf.mxu0
    %v384 = vadd.f32 %v147, %v383
    %v385 = vpop.f32.mrf.mxu0
    %v386 = vadd.f32 %v151, %v385
    %v387 = vpop.f32.mrf.mxu0
    %v388 = vadd.f32 %v147, %v387
    %v389 = vpop.f32.mrf.mxu0
    %v390 = vadd.f32 %v151, %v389
    %391 = vmatprep.mubr.bf16.mxu0 0
    %392 = vmatmul.mubr.bf16.gmra.mxu0 %v287
    %v393 = vpop.f32.mrf.mxu0
    %v394 = vadd.f32 %v147, %v393
    %v395 = vpop.f32.mrf.mxu0
    %v396 = vadd.f32 %v151, %v395
    %v397 = vpop.f32.mrf.mxu0
    %v398 = vadd.f32 %v147, %v397
    %v399 = vpop.f32.mrf.mxu0
    %v400 = vadd.f32 %v151, %v399
    %401 = vdwg.mxu0
    %402 = vmatprep.subr.bf16.mxu0 0
    %403 = vmatpush1.bf16.msra.mxu0 0
    %404 = vmatprep.subr.bf16.mxu0 0
    %405 = vmatpush1.bf16.msra.mxu0 0
    %406 = vmatprep.subr.bf16.mxu0 0
    %407 = vmatpush1.bf16.msra.mxu0 0
    %408 = vmatprep.subr.bf16.mxu0 0
    %409 = vmatpush1.bf16.msra.mxu0 0
    %410 = vmatprep.subr.bf16.mxu0 0
    %411 = vmatpush1.bf16.msra.mxu0 0
    %412 = vmatprep.subr.bf16.mxu0 %v251
    %413 = vmatpush1.bf16.msra.mxu0 %v250
    %414 = vmatprep.subr.bf16.mxu0 %v247
    %415 = vmatpush1.bf16.msra.mxu0 %v246
    %416 = vmatprep.subr.bf16.mxu0 %v243
    %417 = vmatpush1.bf16.msra.mxu0 %v242
    %418 = vmatprep.subr.bf16.mxu0 0
    %419 = vmatpush2.bf16.msra.mxu0 0
    %420 = vmatprep.subr.bf16.mxu0 0
    %421 = vmatpush2.bf16.msra.mxu0 0
    %422 = vmatprep.subr.bf16.mxu0 0
    %423 = vmatpush2.bf16.msra.mxu0 0
    %424 = vmatprep.subr.bf16.mxu0 0
    %425 = vmatpush2.bf16.msra.mxu0 0
    %426 = vmatprep.subr.bf16.mxu0 0
    %427 = vmatpush2.bf16.msra.mxu0 0
    %428 = vmatprep.subr.bf16.mxu0 0
    %429 = vmatpush2.bf16.msra.mxu0 0
    %430 = vmatprep.subr.bf16.mxu0 0
    %431 = vmatpush2.bf16.msra.mxu0 0
    %432 = vmatprep.subr.bf16.mxu0 0
    %433 = vmatpush2.bf16.msra.mxu0 0
    %434 = vmatprep.mubr.bf16.mxu0 0
    %435 = vmatmul.mubr.bf16.gmra.mxu0 %v266
    %v436 = vpop.f32.mrf.mxu0
    %v437 = vadd.f32 %v155, %v436
    %v438 = vpop.f32.mrf.mxu0
    %v439 = vadd.f32 %v159, %v438
    %v440 = vpop.f32.mrf.mxu0
    %v441 = vadd.f32 %v155, %v440
    %v442 = vpop.f32.mrf.mxu0
    %v443 = vadd.f32 %v159, %v442
    %444 = vmatprep.mubr.bf16.mxu0 0
    %445 = vmatmul.mubr.bf16.gmra.mxu0 %v269
    %v446 = vpop.f32.mrf.mxu0
    %v447 = vadd.f32 %v155, %v446
    %v448 = vpop.f32.mrf.mxu0
    %v449 = vadd.f32 %v159, %v448
    %v450 = vpop.f32.mrf.mxu0
    %v451 = vadd.f32 %v155, %v450
    %v452 = vpop.f32.mrf.mxu0
    %v453 = vadd.f32 %v159, %v452
    %454 = vmatprep.mubr.bf16.mxu0 0
    %455 = vmatmul.mubr.bf16.gmra.mxu0 %v272
    %v456 = vpop.f32.mrf.mxu0
    %v457 = vadd.f32 %v155, %v456
    %v458 = vpop.f32.mrf.mxu0
    %v459 = vadd.f32 %v159, %v458
    %v460 = vpop.f32.mrf.mxu0
    %v461 = vadd.f32 %v155, %v460
    %v462 = vpop.f32.mrf.mxu0
    %v463 = vadd.f32 %v159, %v462
    %464 = vmatprep.mubr.bf16.mxu0 0
    %465 = vmatmul.mubr.bf16.gmra.mxu0 %v275
    %v466 = vpop.f32.mrf.mxu0
    %v467 = vadd.f32 %v155, %v466
    %v468 = vpop.f32.mrf.mxu0
    %v469 = vadd.f32 %v159, %v468
    %v470 = vpop.f32.mrf.mxu0
    %v471 = vadd.f32 %v155, %v470
    %v472 = vpop.f32.mrf.mxu0
    %v473 = vadd.f32 %v159, %v472
    %474 = vmatprep.mubr.bf16.mxu0 0
    %475 = vmatmul.mubr.bf16.gmra.mxu0 %v278
    %v476 = vpop.f32.mrf.mxu0
    %v477 = vadd.f32 %v155, %v476
    %v478 = vpop.f32.mrf.mxu0
    %v479 = vadd.f32 %v159, %v478
    %v480 = vpop.f32.mrf.mxu0
    %v481 = vadd.f32 %v155, %v480
    %v482 = vpop.f32.mrf.mxu0
    %v483 = vadd.f32 %v159, %v482
    %484 = vmatprep.mubr.bf16.mxu0 0
    %485 = vmatmul.mubr.bf16.gmra.mxu0 %v281
    %v486 = vpop.f32.mrf.mxu0
    %v487 = vadd.f32 %v155, %v486
    %v488 = vpop.f32.mrf.mxu0
    %v489 = vadd.f32 %v159, %v488
    %v490 = vpop.f32.mrf.mxu0
    %v491 = vadd.f32 %v155, %v490
    %v492 = vpop.f32.mrf.mxu0
    %v493 = vadd.f32 %v159, %v492
    %494 = vmatprep.mubr.bf16.mxu0 0
    %495 = vmatmul.mubr.bf16.gmra.mxu0 %v284
    %v496 = vpop.f32.mrf.mxu0
    %v497 = vadd.f32 %v155, %v496
    %v498 = vpop.f32.mrf.mxu0
    %v499 = vadd.f32 %v159, %v498
    %v500 = vpop.f32.mrf.mxu0
    %v501 = vadd.f32 %v155, %v500
    %v502 = vpop.f32.mrf.mxu0
    %v503 = vadd.f32 %v159, %v502
    %504 = vmatprep.mubr.bf16.mxu0 0
    %505 = vmatmul.mubr.bf16.gmra.mxu0 %v287
    %v506 = vpop.f32.mrf.mxu0
    %v507 = vadd.f32 %v155, %v506
    %v508 = vpop.f32.mrf.mxu0
    %v509 = vadd.f32 %v159, %v508
    %v510 = vpop.f32.mrf.mxu0
    %v511 = vadd.f32 %v155, %v510
    %v512 = vpop.f32.mrf.mxu0
    %v513 = vadd.f32 %v159, %v512
    %514 = vdwg.mxu0
    %v515 = vmax.f32 %v324, 0.0
    %v516 = vmax.f32 %v326, 0.0
    %v517 = vmax.f32 %v437, 0.0
    %v518 = vmax.f32 %v439, 0.0
    %v519 = vmax.f32 %v328, 0.0
    %v520 = vmax.f32 %v330, 0.0
    %v521 = vmax.f32 %v441, 0.0
    %v522 = vmax.f32 %v443, 0.0
    %v523 = vmax.f32 %v334, 0.0
    %v524 = vmax.f32 %v336, 0.0
    %v525 = vmax.f32 %v447, 0.0
    %v526 = vmax.f32 %v449, 0.0
    %v527 = vmax.f32 %v338, 0.0
    %v528 = vmax.f32 %v340, 0.0
    %v529 = vmax.f32 %v451, 0.0
    %v530 = vmax.f32 %v453, 0.0
    %v531 = vmax.f32 %v344, 0.0
    %v532 = vmax.f32 %v346, 0.0
    %v533 = vmax.f32 %v457, 0.0
    %v534 = vmax.f32 %v459, 0.0
    %v535 = vmax.f32 %v348, 0.0
    %v536 = vmax.f32 %v350, 0.0
    %v537 = vmax.f32 %v461, 0.0
    %v538 = vmax.f32 %v463, 0.0
    %v539 = vmax.f32 %v354, 0.0
    %v540 = vmax.f32 %v356, 0.0
    %v541 = vmax.f32 %v467, 0.0
    %v542 = vmax.f32 %v469, 0.0
    %v543 = vmax.f32 %v358, 0.0
    %v544 = vmax.f32 %v360, 0.0
    %v545 = vmax.f32 %v471, 0.0
    %v546 = vmax.f32 %v473, 0.0
    %v547 = vmax.f32 %v364, 0.0
    %v548 = vmax.f32 %v366, 0.0
    %v549 = vmax.f32 %v477, 0.0
    %v550 = vmax.f32 %v479, 0.0
    %v551 = vmax.f32 %v368, 0.0
    %v552 = vmax.f32 %v370, 0.0
    %v553 = vmax.f32 %v481, 0.0
    %v554 = vmax.f32 %v483, 0.0
    %v555 = vmax.f32 %v374, 0.0
    %v556 = vmax.f32 %v376, 0.0
    %v557 = vmax.f32 %v487, 0.0
    %v558 = vmax.f32 %v489, 0.0
    %v559 = vmax.f32 %v378, 0.0
    %v560 = vmax.f32 %v380, 0.0
    %v561 = vmax.f32 %v491, 0.0
    %v562 = vmax.f32 %v493, 0.0
    %v563 = vmax.f32 %v384, 0.0
    %v564 = vmax.f32 %v386, 0.0
    %v565 = vmax.f32 %v497, 0.0
    %v566 = vmax.f32 %v499, 0.0
    %v567 = vmax.f32 %v388, 0.0
    %v568 = vmax.f32 %v390, 0.0
    %v569 = vmax.f32 %v501, 0.0
    %v570 = vmax.f32 %v503, 0.0
    %v571 = vmax.f32 %v394, 0.0
    %v572 = vmax.f32 %v396, 0.0
    %v573 = vmax.f32 %v507, 0.0
    %v574 = vmax.f32 %v509, 0.0
    %v575 = vmax.f32 %v398, 0.0
    %v576 = vmax.f32 %v400, 0.0
    %v577 = vmax.f32 %v511, 0.0
    %v578 = vmax.f32 %v513, 0.0
    %v579 = vadd.f32 %v515, %v519
    %v580 = vrot.slane %v579, 4
    %v581 = vadd.f32 %v579, %v580
    %v582 = vrot.slane %v581, 2
    %v583 = vadd.f32 %v581, %v582
    %v584 = vrot.slane %v583, 1
    %v585 = vadd.f32 %v583, %v584
    %v586 = vadd.f32 %v516, %v520
    %v587 = vrot.slane %v586, 4
    %v588 = vadd.f32 %v586, %v587
    %v589 = vrot.slane %v588, 2
    %v590 = vadd.f32 %v588, %v589
    %v591 = vrot.slane %v590, 1
    %v592 = vadd.f32 %v590, %v591
    %v593 = vadd.f32 %v517, %v521
    %v594 = vrot.slane %v593, 4
    %v595 = vadd.f32 %v593, %v594
    %v596 = vrot.slane %v595, 2
    %v597 = vadd.f32 %v595, %v596
    %v598 = vrot.slane %v597, 1
    %v599 = vadd.f32 %v597, %v598
    %v600 = vadd.f32 %v518, %v522
    %v601 = vrot.slane %v600, 4
    %v602 = vadd.f32 %v600, %v601
    %v603 = vrot.slane %v602, 2
    %v604 = vadd.f32 %v602, %v603
    %v605 = vrot.slane %v604, 1
    %v606 = vadd.f32 %v604, %v605
    %v607 = vadd.f32 %v523, %v527
    %v608 = vrot.slane %v607, 4
    %v609 = vadd.f32 %v607, %v608
    %v610 = vrot.slane %v609, 2
    %v611 = vadd.f32 %v609, %v610
    %v612 = vrot.slane %v611, 1
    %v613 = vadd.f32 %v611, %v612
    %v614 = vadd.f32 %v524, %v528
    %v615 = vrot.slane %v614, 4
    %v616 = vadd.f32 %v614, %v615
    %v617 = vrot.slane %v616, 2
    %v618 = vadd.f32 %v616, %v617
    %v619 = vrot.slane %v618, 1
    %v620 = vadd.f32 %v618, %v619
    %v621 = vadd.f32 %v525, %v529
    %v622 = vrot.slane %v621, 4
    %v623 = vadd.f32 %v621, %v622
    %v624 = vrot.slane %v623, 2
    %v625 = vadd.f32 %v623, %v624
    %v626 = vrot.slane %v625, 1
    %v627 = vadd.f32 %v625, %v626
    %v628 = vadd.f32 %v526, %v530
    %v629 = vrot.slane %v628, 4
    %v630 = vadd.f32 %v628, %v629
    %v631 = vrot.slane %v630, 2
    %v632 = vadd.f32 %v630, %v631
    %v633 = vrot.slane %v632, 1
    %v634 = vadd.f32 %v632, %v633
    %v635 = vadd.f32 %v531, %v535
    %v636 = vrot.slane %v635, 4
    %v637 = vadd.f32 %v635, %v636
    %v638 = vrot.slane %v637, 2
    %v639 = vadd.f32 %v637, %v638
    %v640 = vrot.slane %v639, 1
    %v641 = vadd.f32 %v639, %v640
    %v642 = vadd.f32 %v532, %v536
    %v643 = vrot.slane %v642, 4
    %v644 = vadd.f32 %v642, %v643
    %v645 = vrot.slane %v644, 2
    %v646 = vadd.f32 %v644, %v645
    %v647 = vrot.slane %v646, 1
    %v648 = vadd.f32 %v646, %v647
    %v649 = vadd.f32 %v533, %v537
    %v650 = vrot.slane %v649, 4
    %v651 = vadd.f32 %v649, %v650
    %v652 = vrot.slane %v651, 2
    %v653 = vadd.f32 %v651, %v652
    %v654 = vrot.slane %v653, 1
    %v655 = vadd.f32 %v653, %v654
    %v656 = vadd.f32 %v534, %v538
    %v657 = vrot.slane %v656, 4
    %v658 = vadd.f32 %v656, %v657
    %v659 = vrot.slane %v658, 2
    %v660 = vadd.f32 %v658, %v659
    %v661 = vrot.slane %v660, 1
    %v662 = vadd.f32 %v660, %v661
    %v663 = vadd.f32 %v539, %v543
    %v664 = vrot.slane %v663, 4
    %v665 = vadd.f32 %v663, %v664
    %v666 = vrot.slane %v665, 2
    %v667 = vadd.f32 %v665, %v666
    %v668 = vrot.slane %v667, 1
    %v669 = vadd.f32 %v667, %v668
    %v670 = vadd.f32 %v540, %v544
    %v671 = vrot.slane %v670, 4
    %v672 = vadd.f32 %v670, %v671
    %v673 = vrot.slane %v672, 2
    %v674 = vadd.f32 %v672, %v673
    %v675 = vrot.slane %v674, 1
    %v676 = vadd.f32 %v674, %v675
    %v677 = vadd.f32 %v541, %v545
    %v678 = vrot.slane %v677, 4
    %v679 = vadd.f32 %v677, %v678
    %v680 = vrot.slane %v679, 2
    %v681 = vadd.f32 %v679, %v680
    %v682 = vrot.slane %v681, 1
    %v683 = vadd.f32 %v681, %v682
    %v684 = vadd.f32 %v542, %v546
    %v685 = vrot.slane %v684, 4
    %v686 = vadd.f32 %v684, %v685
    %v687 = vrot.slane %v686, 2
    %v688 = vadd.f32 %v686, %v687
    %v689 = vrot.slane %v688, 1
    %v690 = vadd.f32 %v688, %v689
    %v691 = vadd.f32 %v547, %v551
    %v692 = vrot.slane %v691, 4
    %v693 = vadd.f32 %v691, %v692
    %v694 = vrot.slane %v693, 2
    %v695 = vadd.f32 %v693, %v694
    %v696 = vrot.slane %v695, 1
    %v697 = vadd.f32 %v695, %v696
    %v698 = vadd.f32 %v548, %v552
    %v699 = vrot.slane %v698, 4
    %v700 = vadd.f32 %v698, %v699
    %v701 = vrot.slane %v700, 2
    %v702 = vadd.f32 %v700, %v701
    %v703 = vrot.slane %v702, 1
    %v704 = vadd.f32 %v702, %v703
    %v705 = vadd.f32 %v549, %v553
    %v706 = vrot.slane %v705, 4
    %v707 = vadd.f32 %v705, %v706
    %v708 = vrot.slane %v707, 2
    %v709 = vadd.f32 %v707, %v708
    %v710 = vrot.slane %v709, 1
    %v711 = vadd.f32 %v709, %v710
    %v712 = vadd.f32 %v550, %v554
    %v713 = vrot.slane %v712, 4
    %v714 = vadd.f32 %v712, %v713
    %v715 = vrot.slane %v714, 2
    %v716 = vadd.f32 %v714, %v715
    %v717 = vrot.slane %v716, 1
    %v718 = vadd.f32 %v716, %v717
    %v719 = vadd.f32 %v555, %v559
    %v720 = vrot.slane %v719, 4
    %v721 = vadd.f32 %v719, %v720
    %v722 = vrot.slane %v721, 2
    %v723 = vadd.f32 %v721, %v722
    %v724 = vrot.slane %v723, 1
    %v725 = vadd.f32 %v723, %v724
    %v726 = vadd.f32 %v556, %v560
    %v727 = vrot.slane %v726, 4
    %v728 = vadd.f32 %v726, %v727
    %v729 = vrot.slane %v728, 2
    %v730 = vadd.f32 %v728, %v729
    %v731 = vrot.slane %v730, 1
    %v732 = vadd.f32 %v730, %v731
    %v733 = vadd.f32 %v557, %v561
    %v734 = vrot.slane %v733, 4
    %v735 = vadd.f32 %v733, %v734
    %v736 = vrot.slane %v735, 2
    %v737 = vadd.f32 %v735, %v736
    %v738 = vrot.slane %v737, 1
    %v739 = vadd.f32 %v737, %v738
    %v740 = vadd.f32 %v558, %v562
    %v741 = vrot.slane %v740, 4
    %v742 = vadd.f32 %v740, %v741
    %v743 = vrot.slane %v742, 2
    %v744 = vadd.f32 %v742, %v743
    %v745 = vrot.slane %v744, 1
    %v746 = vadd.f32 %v744, %v745
    %v747 = vadd.f32 %v563, %v567
    %v748 = vrot.slane %v747, 4
    %v749 = vadd.f32 %v747, %v748
    %v750 = vrot.slane %v749, 2
    %v751 = vadd.f32 %v749, %v750
    %v752 = vrot.slane %v751, 1
    %v753 = vadd.f32 %v751, %v752
    %v754 = vadd.f32 %v564, %v568
    %v755 = vrot.slane %v754, 4
    %v756 = vadd.f32 %v754, %v755
    %v757 = vrot.slane %v756, 2
    %v758 = vadd.f32 %v756, %v757
    %v759 = vrot.slane %v758, 1
    %v760 = vadd.f32 %v758, %v759
    %v761 = vadd.f32 %v565, %v569
    %v762 = vrot.slane %v761, 4
    %v763 = vadd.f32 %v761, %v762
    %v764 = vrot.slane %v763, 2
    %v765 = vadd.f32 %v763, %v764
    %v766 = vrot.slane %v765, 1
    %v767 = vadd.f32 %v765, %v766
    %v768 = vadd.f32 %v566, %v570
    %v769 = vrot.slane %v768, 4
    %v770 = vadd.f32 %v768, %v769
    %v771 = vrot.slane %v770, 2
    %v772 = vadd.f32 %v770, %v771
    %v773 = vrot.slane %v772, 1
    %v774 = vadd.f32 %v772, %v773
    %v775 = vadd.f32 %v571, %v575
    %v776 = vrot.slane %v775, 4
    %v777 = vadd.f32 %v775, %v776
    %v778 = vrot.slane %v777, 2
    %v779 = vadd.f32 %v777, %v778
    %v780 = vrot.slane %v779, 1
    %v781 = vadd.f32 %v779, %v780
    %v782 = vadd.f32 %v572, %v576
    %v783 = vrot.slane %v782, 4
    %v784 = vadd.f32 %v782, %v783
    %v785 = vrot.slane %v784, 2
    %v786 = vadd.f32 %v784, %v785
    %v787 = vrot.slane %v786, 1
    %v788 = vadd.f32 %v786, %v787
    %v789 = vadd.f32 %v573, %v577
    %v790 = vrot.slane %v789, 4
    %v791 = vadd.f32 %v789, %v790
    %v792 = vrot.slane %v791, 2
    %v793 = vadd.f32 %v791, %v792
    %v794 = vrot.slane %v793, 1
    %v795 = vadd.f32 %v793, %v794
    %v796 = vadd.f32 %v574, %v578
    %v797 = vrot.slane %v796, 4
    %v798 = vadd.f32 %v796, %v797
    %v799 = vrot.slane %v798, 2
    %v800 = vadd.f32 %v798, %v799
    %v801 = vrot.slane %v800, 1
    %v802 = vadd.f32 %v800, %v801
    %v803 = vmul.f32 %v585, 0.0625
    %v804 = vmul.f32 %v592, 0.0625
    %v805 = vmul.f32 %v599, 0.0625
    %v806 = vmul.f32 %v606, 0.0625
    %v807 = vmul.f32 %v613, 0.0625
    %v808 = vmul.f32 %v620, 0.0625
    %v809 = vmul.f32 %v627, 0.0625
    %v810 = vmul.f32 %v634, 0.0625
    %v811 = vmul.f32 %v641, 0.0625
    %v812 = vmul.f32 %v648, 0.0625
    %v813 = vmul.f32 %v655, 0.0625
    %v814 = vmul.f32 %v662, 0.0625
    %v815 = vmul.f32 %v669, 0.0625
    %v816 = vmul.f32 %v676, 0.0625
    %v817 = vmul.f32 %v683, 0.0625
    %v818 = vmul.f32 %v690, 0.0625
    %v819 = vmul.f32 %v697, 0.0625
    %v820 = vmul.f32 %v704, 0.0625
    %v821 = vmul.f32 %v711, 0.0625
    %v822 = vmul.f32 %v718, 0.0625
    %v823 = vmul.f32 %v725, 0.0625
    %v824 = vmul.f32 %v732, 0.0625
    %v825 = vmul.f32 %v739, 0.0625
    %v826 = vmul.f32 %v746, 0.0625
    %v827 = vmul.f32 %v753, 0.0625
    %v828 = vmul.f32 %v760, 0.0625
    %v829 = vmul.f32 %v767, 0.0625
    %v830 = vmul.f32 %v774, 0.0625
    %v831 = vmul.f32 %v781, 0.0625
    %v832 = vmul.f32 %v788, 0.0625
    %v833 = vmul.f32 %v795, 0.0625
    %v834 = vmul.f32 %v802, 0.0625
    %v835 = vpack.c.bf16 %v803, %v803
    %v836 = vpack.c.bf16 %v804, %v804
    %v837 = vpack.c.bf16 %v805, %v805
    %v838 = vpack.c.bf16 %v806, %v806
    %v839 = vpack.c.bf16 %v807, %v807
    %v840 = vpack.c.bf16 %v808, %v808
    %v841 = vpack.c.bf16 %v809, %v809
    %v842 = vpack.c.bf16 %v810, %v810
    %v843 = vpack.c.bf16 %v811, %v811
    %v844 = vpack.c.bf16 %v812, %v812
    %v845 = vpack.c.bf16 %v813, %v813
    %v846 = vpack.c.bf16 %v814, %v814
    %v847 = vpack.c.bf16 %v815, %v815
    %v848 = vpack.c.bf16 %v816, %v816
    %v849 = vpack.c.bf16 %v817, %v817
    %v850 = vpack.c.bf16 %v818, %v818
    %v851 = vpack.c.bf16 %v819, %v819
    %v852 = vpack.c.bf16 %v820, %v820
    %v853 = vpack.c.bf16 %v821, %v821
    %v854 = vpack.c.bf16 %v822, %v822
    %v855 = vpack.c.bf16 %v823, %v823
    %v856 = vpack.c.bf16 %v824, %v824
    %v857 = vpack.c.bf16 %v825, %v825
    %v858 = vpack.c.bf16 %v826, %v826
    %v859 = vpack.c.bf16 %v827, %v827
    %v860 = vpack.c.bf16 %v828, %v828
    %v861 = vpack.c.bf16 %v829, %v829
    %v862 = vpack.c.bf16 %v830, %v830
    %v863 = vpack.c.bf16 %v831, %v831
    %v864 = vpack.c.bf16 %v832, %v832
    %v865 = vpack.c.bf16 %v833, %v833
    %v866 = vpack.c.bf16 %v834, %v834
    %v867 = vld [vmem:[#allocation9] sm:$0xff]
    %v868 = vld [vmem:[#allocation9 + $0x8] sm:$0xff]
    %v869 = vld [vmem:[#allocation9 + $0x10] sm:$0xff]
    %v870 = vld [vmem:[#allocation9 + $0x18] sm:$0xff]
    %v871 = vld [vmem:[#allocation9 + $0x20] sm:$0xff]
    %v872 = vld [vmem:[#allocation9 + $0x28] sm:$0xff]
    %v873 = vld [vmem:[#allocation9 + $0x30] sm:$0xff]
    %v874 = vld [vmem:[#allocation9 + $0x38] sm:$0xff]
    %v875 = vld [vmem:[#allocation9 + $0x40] sm:$0xff]
    %v876 = vld [vmem:[#allocation9 + $0x48] sm:$0xff]
    %v877 = vld [vmem:[#allocation9 + $0x50] sm:$0xff]
    %v878 = vld [vmem:[#allocation9 + $0x58] sm:$0xff]
    %v879 = vld [vmem:[#allocation9 + $0x60] sm:$0xff]
    %v880 = vld [vmem:[#allocation9 + $0x68] sm:$0xff]
    %v881 = vld [vmem:[#allocation9 + $0x70] sm:$0xff]
    %v882 = vld [vmem:[#allocation9 + $0x78] sm:$0xff]
    %v883 = vld [vmem:[#allocation9 + $0x80] sm:$0xff]
    %v884 = vld [vmem:[#allocation9 + $0x88] sm:$0xff]
    %v885 = vld [vmem:[#allocation9 + $0x90] sm:$0xff]
    %v886 = vld [vmem:[#allocation9 + $0x98] sm:$0xff]
    %v887 = vld [vmem:[#allocation9 + $0xa0] sm:$0xff]
    %v888 = vld [vmem:[#allocation9 + $0xa8] sm:$0xff]
    %v889 = vld [vmem:[#allocation9 + $0xb0] sm:$0xff]
    %v890 = vld [vmem:[#allocation9 + $0xb8] sm:$0xff]
    %v891 = vld [vmem:[#allocation9 + $0xc0] sm:$0xff]
    %v892 = vld [vmem:[#allocation9 + $0xc8] sm:$0xff]
    %v893 = vld [vmem:[#allocation9 + $0xd0] sm:$0xff]
    %v894 = vld [vmem:[#allocation9 + $0xd8] sm:$0xff]
    %v895 = vld [vmem:[#allocation9 + $0xe0] sm:$0xff]
    %v896 = vld [vmem:[#allocation9 + $0xe8] sm:$0xff]
    %v897 = vld [vmem:[#allocation9 + $0xf0] sm:$0xff]
    %v898 = vld [vmem:[#allocation9 + $0xf8] sm:$0xff]
    %v899 = vld [vmem:[#allocation9 + $0x100] sm:$0xff]
    %v900 = vld [vmem:[#allocation9 + $0x108] sm:$0xff]
    %v901 = vld [vmem:[#allocation9 + $0x110] sm:$0xff]
    %v902 = vld [vmem:[#allocation9 + $0x118] sm:$0xff]
    %v903 = vld [vmem:[#allocation9 + $0x120] sm:$0xff]
    %v904 = vld [vmem:[#allocation9 + $0x128] sm:$0xff]
    %v905 = vld [vmem:[#allocation9 + $0x130] sm:$0xff]
    %v906 = vld [vmem:[#allocation9 + $0x138] sm:$0xff]
    %v907 = vld [vmem:[#allocation9 + $0x140] sm:$0xff]
    %v908 = vld [vmem:[#allocation9 + $0x148] sm:$0xff]
    %v909 = vld [vmem:[#allocation9 + $0x150] sm:$0xff]
    %v910 = vld [vmem:[#allocation9 + $0x158] sm:$0xff]
    %v911 = vld [vmem:[#allocation9 + $0x160] sm:$0xff]
    %v912 = vld [vmem:[#allocation9 + $0x168] sm:$0xff]
    %v913 = vld [vmem:[#allocation9 + $0x170] sm:$0xff]
    %v914 = vld [vmem:[#allocation9 + $0x178] sm:$0xff]
    %v915 = vld [vmem:[#allocation9 + $0x180] sm:$0xff]
    %v916 = vld [vmem:[#allocation9 + $0x188] sm:$0xff]
    %v917 = vld [vmem:[#allocation9 + $0x190] sm:$0xff]
    %v918 = vld [vmem:[#allocation9 + $0x198] sm:$0xff]
    %v919 = vld [vmem:[#allocation9 + $0x1a0] sm:$0xff]
    %v920 = vld [vmem:[#allocation9 + $0x1a8] sm:$0xff]
    %v921 = vld [vmem:[#allocation9 + $0x1b0] sm:$0xff]
    %v922 = vld [vmem:[#allocation9 + $0x1b8] sm:$0xff]
    %v923 = vld [vmem:[#allocation9 + $0x1c0] sm:$0xff]
    %v924 = vld [vmem:[#allocation9 + $0x1c8] sm:$0xff]
    %v925 = vld [vmem:[#allocation9 + $0x1d0] sm:$0xff]
    %v926 = vld [vmem:[#allocation9 + $0x1d8] sm:$0xff]
    %v927 = vld [vmem:[#allocation9 + $0x1e0] sm:$0xff]
    %v928 = vld [vmem:[#allocation9 + $0x1e8] sm:$0xff]
    %v929 = vld [vmem:[#allocation9 + $0x1f0] sm:$0xff]
    %v930 = vld [vmem:[#allocation9 + $0x1f8] sm:$0xff]
    %v931 = vld [vmem:[#allocation9 + $0x200] sm:$0xff]
    %v932 = vld [vmem:[#allocation9 + $0x208] sm:$0xff]
    %v933 = vld [vmem:[#allocation9 + $0x210] sm:$0xff]
    %v934 = vld [vmem:[#allocation9 + $0x218] sm:$0xff]
    %v935 = vld [vmem:[#allocation9 + $0x220] sm:$0xff]
    %v936 = vld [vmem:[#allocation9 + $0x228] sm:$0xff]
    %v937 = vld [vmem:[#allocation9 + $0x230] sm:$0xff]
    %v938 = vld [vmem:[#allocation9 + $0x238] sm:$0xff]
    %v939 = vld [vmem:[#allocation9 + $0x240] sm:$0xff]
    %v940 = vld [vmem:[#allocation9 + $0x248] sm:$0xff]
    %v941 = vld [vmem:[#allocation9 + $0x250] sm:$0xff]
    %v942 = vld [vmem:[#allocation9 + $0x258] sm:$0xff]
    %v943 = vld [vmem:[#allocation9 + $0x260] sm:$0xff]
    %v944 = vld [vmem:[#allocation9 + $0x268] sm:$0xff]
    %v945 = vld [vmem:[#allocation9 + $0x270] sm:$0xff]
    %v946 = vld [vmem:[#allocation9 + $0x278] sm:$0xff]
    %v947 = vld [vmem:[#allocation9 + $0x280] sm:$0xff]
    %v948 = vld [vmem:[#allocation9 + $0x288] sm:$0xff]
    %v949 = vld [vmem:[#allocation9 + $0x290] sm:$0xff]
    %v950 = vld [vmem:[#allocation9 + $0x298] sm:$0xff]
    %v951 = vld [vmem:[#allocation9 + $0x2a0] sm:$0xff]
    %v952 = vld [vmem:[#allocation9 + $0x2a8] sm:$0xff]
    %v953 = vld [vmem:[#allocation9 + $0x2b0] sm:$0xff]
    %v954 = vld [vmem:[#allocation9 + $0x2b8] sm:$0xff]
    %v955 = vld [vmem:[#allocation9 + $0x2c0] sm:$0xff]
    %v956 = vld [vmem:[#allocation9 + $0x2c8] sm:$0xff]
    %v957 = vld [vmem:[#allocation9 + $0x2d0] sm:$0xff]
    %v958 = vld [vmem:[#allocation9 + $0x2d8] sm:$0xff]
    %v959 = vld [vmem:[#allocation9 + $0x2e0] sm:$0xff]
    %v960 = vld [vmem:[#allocation9 + $0x2e8] sm:$0xff]
    %v961 = vld [vmem:[#allocation9 + $0x2f0] sm:$0xff]
    %v962 = vld [vmem:[#allocation9 + $0x2f8] sm:$0xff]
    %v963 = vld [vmem:[#allocation9 + $0x300] sm:$0xff]
    %v964 = vld [vmem:[#allocation9 + $0x308] sm:$0xff]
    %v965 = vld [vmem:[#allocation9 + $0x310] sm:$0xff]
    %v966 = vld [vmem:[#allocation9 + $0x318] sm:$0xff]
    %v967 = vld [vmem:[#allocation9 + $0x320] sm:$0xff]
    %v968 = vld [vmem:[#allocation9 + $0x328] sm:$0xff]
    %v969 = vld [vmem:[#allocation9 + $0x330] sm:$0xff]
    %v970 = vld [vmem:[#allocation9 + $0x338] sm:$0xff]
    %v971 = vld [vmem:[#allocation9 + $0x340] sm:$0xff]
    %v972 = vld [vmem:[#allocation9 + $0x348] sm:$0xff]
    %v973 = vld [vmem:[#allocation9 + $0x350] sm:$0xff]
    %v974 = vld [vmem:[#allocation9 + $0x358] sm:$0xff]
    %v975 = vld [vmem:[#allocation9 + $0x360] sm:$0xff]
    %v976 = vld [vmem:[#allocation9 + $0x368] sm:$0xff]
    %v977 = vld [vmem:[#allocation9 + $0x370] sm:$0xff]
    %v978 = vld [vmem:[#allocation9 + $0x378] sm:$0xff]
    %v979 = vld [vmem:[#allocation9 + $0x380] sm:$0xff]
    %v980 = vld [vmem:[#allocation9 + $0x388] sm:$0xff]
    %v981 = vld [vmem:[#allocation9 + $0x390] sm:$0xff]
    %v982 = vld [vmem:[#allocation9 + $0x398] sm:$0xff]
    %v983 = vld [vmem:[#allocation9 + $0x3a0] sm:$0xff]
    %v984 = vld [vmem:[#allocation9 + $0x3a8] sm:$0xff]
    %v985 = vld [vmem:[#allocation9 + $0x3b0] sm:$0xff]
    %v986 = vld [vmem:[#allocation9 + $0x3b8] sm:$0xff]
    %v987 = vld [vmem:[#allocation9 + $0x3c0] sm:$0xff]
    %v988 = vld [vmem:[#allocation9 + $0x3c8] sm:$0xff]
    %v989 = vld [vmem:[#allocation9 + $0x3d0] sm:$0xff]
    %v990 = vld [vmem:[#allocation9 + $0x3d8] sm:$0xff]
    %v991 = vld [vmem:[#allocation9 + $0x3e0] sm:$0xff]
    %v992 = vld [vmem:[#allocation9 + $0x3e8] sm:$0xff]
    %v993 = vld [vmem:[#allocation9 + $0x3f0] sm:$0xff]
    %v994 = vld [vmem:[#allocation9 + $0x3f8] sm:$0xff]
    %v995 = vld [vmem:[#allocation9 + $0x400] sm:$0xff]
    %v996 = vld [vmem:[#allocation9 + $0x408] sm:$0xff]
    %v997 = vld [vmem:[#allocation9 + $0x410] sm:$0xff]
    %v998 = vld [vmem:[#allocation9 + $0x418] sm:$0xff]
    %v999 = vld [vmem:[#allocation9 + $0x420] sm:$0xff]
    %v1000 = vld [vmem:[#allocation9 + $0x428] sm:$0xff]
    %v1001 = vld [vmem:[#allocation9 + $0x430] sm:$0xff]
    %v1002 = vld [vmem:[#allocation9 + $0x438] sm:$0xff]
    %v1003 = vld [vmem:[#allocation9 + $0x440] sm:$0xff]
    %v1004 = vld [vmem:[#allocation9 + $0x448] sm:$0xff]
    %v1005 = vld [vmem:[#allocation9 + $0x450] sm:$0xff]
    %v1006 = vld [vmem:[#allocation9 + $0x458] sm:$0xff]
    %v1007 = vld [vmem:[#allocation9 + $0x460] sm:$0xff]
    %v1008 = vld [vmem:[#allocation9 + $0x468] sm:$0xff]
    %v1009 = vld [vmem:[#allocation9 + $0x470] sm:$0xff]
    %v1010 = vld [vmem:[#allocation9 + $0x478] sm:$0xff]
    %v1011 = vld [vmem:[#allocation9 + $0x480] sm:$0xff]
    %v1012 = vld [vmem:[#allocation9 + $0x488] sm:$0xff]
    %v1013 = vld [vmem:[#allocation9 + $0x490] sm:$0xff]
    %v1014 = vld [vmem:[#allocation9 + $0x498] sm:$0xff]
    %v1015 = vld [vmem:[#allocation9 + $0x4a0] sm:$0xff]
    %v1016 = vld [vmem:[#allocation9 + $0x4a8] sm:$0xff]
    %v1017 = vld [vmem:[#allocation9 + $0x4b0] sm:$0xff]
    %v1018 = vld [vmem:[#allocation9 + $0x4b8] sm:$0xff]
    %v1019 = vld [vmem:[#allocation9 + $0x4c0] sm:$0xff]
    %v1020 = vld [vmem:[#allocation9 + $0x4c8] sm:$0xff]
    %v1021 = vld [vmem:[#allocation9 + $0x4d0] sm:$0xff]
    %v1022 = vld [vmem:[#allocation9 + $0x4d8] sm:$0xff]
    %v1023 = vld [vmem:[#allocation9 + $0x4e0] sm:$0xff]
    %v1024 = vld [vmem:[#allocation9 + $0x4e8] sm:$0xff]
    %v1025 = vld [vmem:[#allocation9 + $0x4f0] sm:$0xff]
    %v1026 = vld [vmem:[#allocation9 + $0x4f8] sm:$0xff]
    %v1027 = vld [vmem:[#allocation9 + $0x500] sm:$0xff]
    %v1028 = vld [vmem:[#allocation9 + $0x508] sm:$0xff]
    %v1029 = vld [vmem:[#allocation9 + $0x510] sm:$0xff]
    %v1030 = vld [vmem:[#allocation9 + $0x518] sm:$0xff]
    %v1031 = vld [vmem:[#allocation9 + $0x520] sm:$0xff]
    %v1032 = vld [vmem:[#allocation9 + $0x528] sm:$0xff]
    %v1033 = vld [vmem:[#allocation9 + $0x530] sm:$0xff]
    %v1034 = vld [vmem:[#allocation9 + $0x538] sm:$0xff]
    %v1035 = vld [vmem:[#allocation9 + $0x540] sm:$0xff]
    %v1036 = vld [vmem:[#allocation9 + $0x548] sm:$0xff]
    %v1037 = vld [vmem:[#allocation9 + $0x550] sm:$0xff]
    %v1038 = vld [vmem:[#allocation9 + $0x558] sm:$0xff]
    %v1039 = vld [vmem:[#allocation9 + $0x560] sm:$0xff]
    %v1040 = vld [vmem:[#allocation9 + $0x568] sm:$0xff]
    %v1041 = vld [vmem:[#allocation9 + $0x570] sm:$0xff]
    %v1042 = vld [vmem:[#allocation9 + $0x578] sm:$0xff]
    %v1043 = vld [vmem:[#allocation9 + $0x580] sm:$0xff]
    %v1044 = vld [vmem:[#allocation9 + $0x588] sm:$0xff]
    %v1045 = vld [vmem:[#allocation9 + $0x590] sm:$0xff]
    %v1046 = vld [vmem:[#allocation9 + $0x598] sm:$0xff]
    %v1047 = vld [vmem:[#allocation9 + $0x5a0] sm:$0xff]
    %v1048 = vld [vmem:[#allocation9 + $0x5a8] sm:$0xff]
    %v1049 = vld [vmem:[#allocation9 + $0x5b0] sm:$0xff]
    %v1050 = vld [vmem:[#allocation9 + $0x5b8] sm:$0xff]
    %v1051 = vld [vmem:[#allocation9 + $0x5c0] sm:$0xff]
    %v1052 = vld [vmem:[#allocation9 + $0x5c8] sm:$0xff]
    %v1053 = vld [vmem:[#allocation9 + $0x5d0] sm:$0xff]
    %v1054 = vld [vmem:[#allocation9 + $0x5d8] sm:$0xff]
    %v1055 = vld [vmem:[#allocation9 + $0x5e0] sm:$0xff]
    %v1056 = vld [vmem:[#allocation9 + $0x5e8] sm:$0xff]
    %v1057 = vld [vmem:[#allocation9 + $0x5f0] sm:$0xff]
    %v1058 = vld [vmem:[#allocation9 + $0x5f8] sm:$0xff]
    %v1059 = vld [vmem:[%s4] sm:$0x3f]
    %v1061 = vlaneseq
    %v1062 = vshrl.u32 %v1061, 7
    %v1063 = vsub.s32 0, %v1062
    %v1064 = vrot.slane %v1059, %v1063
    %v1065 = vlaneseq
    %v1066 = vshrl.u32 %v1065, 7
    %v1067 = vsub.s32 1, %v1066
    %v1068 = vrot.slane %v1059, %v1067
    %v1069 = vlaneseq
    %v1070 = vshrl.u32 %v1069, 7
    %v1071 = vsub.s32 2, %v1070
    %v1072 = vrot.slane %v1059, %v1071
    %v1073 = vlaneseq
    %v1074 = vshrl.u32 %v1073, 7
    %v1075 = vsub.s32 3, %v1074
    %v1076 = vrot.slane %v1059, %v1075
    %v1077 = vlaneseq
    %v1078 = vshrl.u32 %v1077, 7
    %v1079 = vsub.s32 4, %v1078
    %v1080 = vrot.slane %v1059, %v1079
    %v1081 = vlaneseq
    %v1082 = vshrl.u32 %v1081, 7
    %v1083 = vsub.s32 5, %v1082
    %v1084 = vrot.slane %v1059, %v1083
    %v1123 = vunpack.c.l.b16 %v835
    %v1124 = vunpack.c.l.b16 %v836
    %v1125 = vunpack.c.l.b16 %v837
    %v1126 = vunpack.c.l.b16 %v838
    %v1127 = vunpack.c.l.b16 %v839
    %v1128 = vunpack.c.l.b16 %v840
    %v1129 = vunpack.c.l.b16 %v841
    %v1130 = vunpack.c.l.b16 %v842
    %v1131 = vunpack.c.l.b16 %v843
    %v1132 = vunpack.c.l.b16 %v844
    %v1133 = vunpack.c.l.b16 %v845
    %v1134 = vunpack.c.l.b16 %v846
    %v1135 = vunpack.c.l.b16 %v847
    %v1136 = vunpack.c.l.b16 %v848
    %v1137 = vunpack.c.l.b16 %v849
    %v1138 = vunpack.c.l.b16 %v850
    %v1139 = vunpack.c.l.b16 %v851
    %v1140 = vunpack.c.l.b16 %v852
    %v1141 = vunpack.c.l.b16 %v853
    %v1142 = vunpack.c.l.b16 %v854
    %v1143 = vunpack.c.l.b16 %v855
    %v1144 = vunpack.c.l.b16 %v856
    %v1145 = vunpack.c.l.b16 %v857
    %v1146 = vunpack.c.l.b16 %v858
    %v1147 = vunpack.c.l.b16 %v859
    %v1148 = vunpack.c.l.b16 %v860
    %v1149 = vunpack.c.l.b16 %v861
    %v1150 = vunpack.c.l.b16 %v862
    %v1151 = vunpack.c.l.b16 %v863
    %v1152 = vunpack.c.l.b16 %v864
    %v1153 = vunpack.c.l.b16 %v865
    %v1154 = vunpack.c.l.b16 %v866
    %vm1155 = vcmask 1041409
    %v1156 = vsel %vm1155, %v1127, %v1123
    %vm1157 = vcmask 1042434
    %v1158 = vsel %vm1157, %v1131, %v1156
    %vm1159 = vcmask 1043459
    %v1160 = vsel %vm1159, %v1135, %v1158
    %vm1161 = vcmask 1044484
    %v1162 = vsel %vm1161, %v1139, %v1160
    %vm1163 = vcmask 1045509
    %v1164 = vsel %vm1163, %v1143, %v1162
    %vm1165 = vcmask 1046534
    %v1166 = vsel %vm1165, %v1147, %v1164
    %vm1167 = vcmask 1047559
    %v1168 = vsel %vm1167, %v1151, %v1166
    %v1169 = vsel %vm1155, %v1128, %v1124
    %v1170 = vsel %vm1157, %v1132, %v1169
    %v1171 = vsel %vm1159, %v1136, %v1170
    %v1172 = vsel %vm1161, %v1140, %v1171
    %v1173 = vsel %vm1163, %v1144, %v1172
    %v1174 = vsel %vm1165, %v1148, %v1173
    %v1175 = vsel %vm1167, %v1152, %v1174
    %v1176 = vsel %vm1155, %v1129, %v1125
    %v1177 = vsel %vm1157, %v1133, %v1176
    %v1178 = vsel %vm1159, %v1137, %v1177
    %v1179 = vsel %vm1161, %v1141, %v1178
    %v1180 = vsel %vm1163, %v1145, %v1179
    %v1181 = vsel %vm1165, %v1149, %v1180
    %v1182 = vsel %vm1167, %v1153, %v1181
    %v1183 = vsel %vm1155, %v1130, %v1126
    %v1184 = vsel %vm1157, %v1134, %v1183
    %v1185 = vsel %vm1159, %v1138, %v1184
    %v1186 = vsel %vm1161, %v1142, %v1185
    %v1187 = vsel %vm1163, %v1146, %v1186
    %v1188 = vsel %vm1165, %v1150, %v1187
    %v1189 = vsel %vm1167, %v1154, %v1188
    %v1190 = vpack.c.b16 %v1168, %v1168
    %v1191 = vpack.c.b16 %v1175, %v1175
    %v1192 = vpack.c.b16 %v1182, %v1182
    %v1193 = vpack.c.b16 %v1189, %v1189
    %v1390 = vunpack.c.l.b16 %v867
    %v1391 = vunpack.c.h.b16 %v867
    %v1392 = vunpack.c.l.b16 %v868
    %v1393 = vunpack.c.h.b16 %v868
    %v1394 = vunpack.c.l.b16 %v869
    %v1395 = vunpack.c.h.b16 %v869
    %v1396 = vunpack.c.l.b16 %v870
    %v1397 = vunpack.c.h.b16 %v870
    %v1398 = vunpack.c.l.b16 %v871
    %v1399 = vunpack.c.h.b16 %v871
    %v1400 = vunpack.c.l.b16 %v872
    %v1401 = vunpack.c.h.b16 %v872
    %v1402 = vunpack.c.l.b16 %v873
    %v1403 = vunpack.c.h.b16 %v873
    %v1404 = vunpack.c.l.b16 %v874
    %v1405 = vunpack.c.h.b16 %v874
    %v1406 = vunpack.c.l.b16 %v875
    %v1407 = vunpack.c.h.b16 %v875
    %v1408 = vunpack.c.l.b16 %v876
    %v1409 = vunpack.c.h.b16 %v876
    %v1410 = vunpack.c.l.b16 %v877
    %v1411 = vunpack.c.h.b16 %v877
    %v1412 = vunpack.c.l.b16 %v878
    %v1413 = vunpack.c.h.b16 %v878
    %v1414 = vunpack.c.l.b16 %v879
    %v1415 = vunpack.c.h.b16 %v879
    %v1416 = vunpack.c.l.b16 %v880
    %v1417 = vunpack.c.h.b16 %v880
    %v1418 = vunpack.c.l.b16 %v881
    %v1419 = vunpack.c.h.b16 %v881
    %v1420 = vunpack.c.l.b16 %v882
    %v1421 = vunpack.c.h.b16 %v882
    %v1422 = vunpack.c.l.b16 %v883
    %v1423 = vunpack.c.h.b16 %v883
    %v1424 = vunpack.c.l.b16 %v884
    %v1425 = vunpack.c.h.b16 %v884
    %v1426 = vunpack.c.l.b16 %v885
    %v1427 = vunpack.c.h.b16 %v885
    %v1428 = vunpack.c.l.b16 %v886
    %v1429 = vunpack.c.h.b16 %v886
    %v1430 = vunpack.c.l.b16 %v887
    %v1431 = vunpack.c.h.b16 %v887
    %v1432 = vunpack.c.l.b16 %v888
    %v1433 = vunpack.c.h.b16 %v888
    %v1434 = vunpack.c.l.b16 %v889
    %v1435 = vunpack.c.h.b16 %v889
    %v1436 = vunpack.c.l.b16 %v890
    %v1437 = vunpack.c.h.b16 %v890
    %v1438 = vunpack.c.l.b16 %v891
    %v1439 = vunpack.c.h.b16 %v891
    %v1440 = vunpack.c.l.b16 %v892
    %v1441 = vunpack.c.h.b16 %v892
    %v1442 = vunpack.c.l.b16 %v893
    %v1443 = vunpack.c.h.b16 %v893
    %v1444 = vunpack.c.l.b16 %v894
    %v1445 = vunpack.c.h.b16 %v894
    %v1446 = vunpack.c.l.b16 %v895
    %v1447 = vunpack.c.h.b16 %v895
    %v1448 = vunpack.c.l.b16 %v896
    %v1449 = vunpack.c.h.b16 %v896
    %v1450 = vunpack.c.l.b16 %v897
    %v1451 = vunpack.c.h.b16 %v897
    %v1452 = vunpack.c.l.b16 %v898
    %v1453 = vunpack.c.h.b16 %v898
    %v1454 = vunpack.c.l.b16 %v899
    %v1455 = vunpack.c.h.b16 %v899
    %v1456 = vunpack.c.l.b16 %v900
    %v1457 = vunpack.c.h.b16 %v900
    %v1458 = vunpack.c.l.b16 %v901
    %v1459 = vunpack.c.h.b16 %v901
    %v1460 = vunpack.c.l.b16 %v902
    %v1461 = vunpack.c.h.b16 %v902
    %v1462 = vunpack.c.l.b16 %v903
    %v1463 = vunpack.c.h.b16 %v903
    %v1464 = vunpack.c.l.b16 %v904
    %v1465 = vunpack.c.h.b16 %v904
    %v1466 = vunpack.c.l.b16 %v905
    %v1467 = vunpack.c.h.b16 %v905
    %v1468 = vunpack.c.l.b16 %v906
    %v1469 = vunpack.c.h.b16 %v906
    %v1470 = vunpack.c.l.b16 %v907
    %v1471 = vunpack.c.h.b16 %v907
    %v1472 = vunpack.c.l.b16 %v908
    %v1473 = vunpack.c.h.b16 %v908
    %v1474 = vunpack.c.l.b16 %v909
    %v1475 = vunpack.c.h.b16 %v909
    %v1476 = vunpack.c.l.b16 %v910
    %v1477 = vunpack.c.h.b16 %v910
    %v1478 = vunpack.c.l.b16 %v911
    %v1479 = vunpack.c.h.b16 %v911
    %v1480 = vunpack.c.l.b16 %v912
    %v1481 = vunpack.c.h.b16 %v912
    %v1482 = vunpack.c.l.b16 %v913
    %v1483 = vunpack.c.h.b16 %v913
    %v1484 = vunpack.c.l.b16 %v914
    %v1485 = vunpack.c.h.b16 %v914
    %v1486 = vunpack.c.l.b16 %v915
    %v1487 = vunpack.c.h.b16 %v915
    %v1488 = vunpack.c.l.b16 %v916
    %v1489 = vunpack.c.h.b16 %v916
    %v1490 = vunpack.c.l.b16 %v917
    %v1491 = vunpack.c.h.b16 %v917
    %v1492 = vunpack.c.l.b16 %v918
    %v1493 = vunpack.c.h.b16 %v918
    %v1494 = vunpack.c.l.b16 %v919
    %v1495 = vunpack.c.h.b16 %v919
    %v1496 = vunpack.c.l.b16 %v920
    %v1497 = vunpack.c.h.b16 %v920
    %v1498 = vunpack.c.l.b16 %v921
    %v1499 = vunpack.c.h.b16 %v921
    %v1500 = vunpack.c.l.b16 %v922
    %v1501 = vunpack.c.h.b16 %v922
    %v1502 = vunpack.c.l.b16 %v923
    %v1503 = vunpack.c.h.b16 %v923
    %v1504 = vunpack.c.l.b16 %v924
    %v1505 = vunpack.c.h.b16 %v924
    %v1506 = vunpack.c.l.b16 %v925
    %v1507 = vunpack.c.h.b16 %v925
    %v1508 = vunpack.c.l.b16 %v926
    %v1509 = vunpack.c.h.b16 %v926
    %v1510 = vunpack.c.l.b16 %v927
    %v1511 = vunpack.c.h.b16 %v927
    %v1512 = vunpack.c.l.b16 %v928
    %v1513 = vunpack.c.h.b16 %v928
    %v1514 = vunpack.c.l.b16 %v929
    %v1515 = vunpack.c.h.b16 %v929
    %v1516 = vunpack.c.l.b16 %v930
    %v1517 = vunpack.c.h.b16 %v930
    %v1518 = vunpack.c.l.b16 %v931
    %v1519 = vunpack.c.h.b16 %v931
    %v1520 = vunpack.c.l.b16 %v932
    %v1521 = vunpack.c.h.b16 %v932
    %v1522 = vunpack.c.l.b16 %v933
    %v1523 = vunpack.c.h.b16 %v933
    %v1524 = vunpack.c.l.b16 %v934
    %v1525 = vunpack.c.h.b16 %v934
    %v1526 = vunpack.c.l.b16 %v935
    %v1527 = vunpack.c.h.b16 %v935
    %v1528 = vunpack.c.l.b16 %v936
    %v1529 = vunpack.c.h.b16 %v936
    %v1530 = vunpack.c.l.b16 %v937
    %v1531 = vunpack.c.h.b16 %v937
    %v1532 = vunpack.c.l.b16 %v938
    %v1533 = vunpack.c.h.b16 %v938
    %v1534 = vunpack.c.l.b16 %v939
    %v1535 = vunpack.c.h.b16 %v939
    %v1536 = vunpack.c.l.b16 %v940
    %v1537 = vunpack.c.h.b16 %v940
    %v1538 = vunpack.c.l.b16 %v941
    %v1539 = vunpack.c.h.b16 %v941
    %v1540 = vunpack.c.l.b16 %v942
    %v1541 = vunpack.c.h.b16 %v942
    %v1542 = vunpack.c.l.b16 %v943
    %v1543 = vunpack.c.h.b16 %v943
    %v1544 = vunpack.c.l.b16 %v944
    %v1545 = vunpack.c.h.b16 %v944
    %v1546 = vunpack.c.l.b16 %v945
    %v1547 = vunpack.c.h.b16 %v945
    %v1548 = vunpack.c.l.b16 %v946
    %v1549 = vunpack.c.h.b16 %v946
    %v1550 = vunpack.c.l.b16 %v947
    %v1551 = vunpack.c.h.b16 %v947
    %v1552 = vunpack.c.l.b16 %v948
    %v1553 = vunpack.c.h.b16 %v948
    %v1554 = vunpack.c.l.b16 %v949
    %v1555 = vunpack.c.h.b16 %v949
    %v1556 = vunpack.c.l.b16 %v950
    %v1557 = vunpack.c.h.b16 %v950
    %v1558 = vunpack.c.l.b16 %v951
    %v1559 = vunpack.c.h.b16 %v951
    %v1560 = vunpack.c.l.b16 %v952
    %v1561 = vunpack.c.h.b16 %v952
    %v1562 = vunpack.c.l.b16 %v953
    %v1563 = vunpack.c.h.b16 %v953
    %v1564 = vunpack.c.l.b16 %v954
    %v1565 = vunpack.c.h.b16 %v954
    %v1566 = vunpack.c.l.b16 %v955
    %v1567 = vunpack.c.h.b16 %v955
    %v1568 = vunpack.c.l.b16 %v956
    %v1569 = vunpack.c.h.b16 %v956
    %v1570 = vunpack.c.l.b16 %v957
    %v1571 = vunpack.c.h.b16 %v957
    %v1572 = vunpack.c.l.b16 %v958
    %v1573 = vunpack.c.h.b16 %v958
    %v1574 = vunpack.c.l.b16 %v959
    %v1575 = vunpack.c.h.b16 %v959
    %v1576 = vunpack.c.l.b16 %v960
    %v1577 = vunpack.c.h.b16 %v960
    %v1578 = vunpack.c.l.b16 %v961
    %v1579 = vunpack.c.h.b16 %v961
    %v1580 = vunpack.c.l.b16 %v962
    %v1581 = vunpack.c.h.b16 %v962
    %v1582 = vunpack.c.l.b16 %v963
    %v1583 = vunpack.c.h.b16 %v963
    %v1584 = vunpack.c.l.b16 %v964
    %v1585 = vunpack.c.h.b16 %v964
    %v1586 = vunpack.c.l.b16 %v965
    %v1587 = vunpack.c.h.b16 %v965
    %v1588 = vunpack.c.l.b16 %v966
    %v1589 = vunpack.c.h.b16 %v966
    %v1590 = vunpack.c.l.b16 %v967
    %v1591 = vunpack.c.h.b16 %v967
    %v1592 = vunpack.c.l.b16 %v968
    %v1593 = vunpack.c.h.b16 %v968
    %v1594 = vunpack.c.l.b16 %v969
    %v1595 = vunpack.c.h.b16 %v969
    %v1596 = vunpack.c.l.b16 %v970
    %v1597 = vunpack.c.h.b16 %v970
    %v1598 = vunpack.c.l.b16 %v971
    %v1599 = vunpack.c.h.b16 %v971
    %v1600 = vunpack.c.l.b16 %v972
    %v1601 = vunpack.c.h.b16 %v972
    %v1602 = vunpack.c.l.b16 %v973
    %v1603 = vunpack.c.h.b16 %v973
    %v1604 = vunpack.c.l.b16 %v974
    %v1605 = vunpack.c.h.b16 %v974
    %v1606 = vunpack.c.l.b16 %v975
    %v1607 = vunpack.c.h.b16 %v975
    %v1608 = vunpack.c.l.b16 %v976
    %v1609 = vunpack.c.h.b16 %v976
    %v1610 = vunpack.c.l.b16 %v977
    %v1611 = vunpack.c.h.b16 %v977
    %v1612 = vunpack.c.l.b16 %v978
    %v1613 = vunpack.c.h.b16 %v978
    %v1614 = vunpack.c.l.b16 %v979
    %v1615 = vunpack.c.h.b16 %v979
    %v1616 = vunpack.c.l.b16 %v980
    %v1617 = vunpack.c.h.b16 %v980
    %v1618 = vunpack.c.l.b16 %v981
    %v1619 = vunpack.c.h.b16 %v981
    %v1620 = vunpack.c.l.b16 %v982
    %v1621 = vunpack.c.h.b16 %v982
    %v1622 = vunpack.c.l.b16 %v983
    %v1623 = vunpack.c.h.b16 %v983
    %v1624 = vunpack.c.l.b16 %v984
    %v1625 = vunpack.c.h.b16 %v984
    %v1626 = vunpack.c.l.b16 %v985
    %v1627 = vunpack.c.h.b16 %v985
    %v1628 = vunpack.c.l.b16 %v986
    %v1629 = vunpack.c.h.b16 %v986
    %v1630 = vunpack.c.l.b16 %v987
    %v1631 = vunpack.c.h.b16 %v987
    %v1632 = vunpack.c.l.b16 %v988
    %v1633 = vunpack.c.h.b16 %v988
    %v1634 = vunpack.c.l.b16 %v989
    %v1635 = vunpack.c.h.b16 %v989
    %v1636 = vunpack.c.l.b16 %v990
    %v1637 = vunpack.c.h.b16 %v990
    %v1638 = vunpack.c.l.b16 %v991
    %v1639 = vunpack.c.h.b16 %v991
    %v1640 = vunpack.c.l.b16 %v992
    %v1641 = vunpack.c.h.b16 %v992
    %v1642 = vunpack.c.l.b16 %v993
    %v1643 = vunpack.c.h.b16 %v993
    %v1644 = vunpack.c.l.b16 %v994
    %v1645 = vunpack.c.h.b16 %v994
    %v1646 = vunpack.c.l.b16 %v995
    %v1647 = vunpack.c.h.b16 %v995
    %v1648 = vunpack.c.l.b16 %v996
    %v1649 = vunpack.c.h.b16 %v996
    %v1650 = vunpack.c.l.b16 %v997
    %v1651 = vunpack.c.h.b16 %v997
    %v1652 = vunpack.c.l.b16 %v998
    %v1653 = vunpack.c.h.b16 %v998
    %v1654 = vunpack.c.l.b16 %v999
    %v1655 = vunpack.c.h.b16 %v999
    %v1656 = vunpack.c.l.b16 %v1000
    %v1657 = vunpack.c.h.b16 %v1000
    %v1658 = vunpack.c.l.b16 %v1001
    %v1659 = vunpack.c.h.b16 %v1001
    %v1660 = vunpack.c.l.b16 %v1002
    %v1661 = vunpack.c.h.b16 %v1002
    %v1662 = vunpack.c.l.b16 %v1003
    %v1663 = vunpack.c.h.b16 %v1003
    %v1664 = vunpack.c.l.b16 %v1004
    %v1665 = vunpack.c.h.b16 %v1004
    %v1666 = vunpack.c.l.b16 %v1005
    %v1667 = vunpack.c.h.b16 %v1005
    %v1668 = vunpack.c.l.b16 %v1006
    %v1669 = vunpack.c.h.b16 %v1006
    %v1670 = vunpack.c.l.b16 %v1007
    %v1671 = vunpack.c.h.b16 %v1007
    %v1672 = vunpack.c.l.b16 %v1008
    %v1673 = vunpack.c.h.b16 %v1008
    %v1674 = vunpack.c.l.b16 %v1009
    %v1675 = vunpack.c.h.b16 %v1009
    %v1676 = vunpack.c.l.b16 %v1010
    %v1677 = vunpack.c.h.b16 %v1010
    %v1678 = vunpack.c.l.b16 %v1011
    %v1679 = vunpack.c.h.b16 %v1011
    %v1680 = vunpack.c.l.b16 %v1012
    %v1681 = vunpack.c.h.b16 %v1012
    %v1682 = vunpack.c.l.b16 %v1013
    %v1683 = vunpack.c.h.b16 %v1013
    %v1684 = vunpack.c.l.b16 %v1014
    %v1685 = vunpack.c.h.b16 %v1014
    %v1686 = vunpack.c.l.b16 %v1015
    %v1687 = vunpack.c.h.b16 %v1015
    %v1688 = vunpack.c.l.b16 %v1016
    %v1689 = vunpack.c.h.b16 %v1016
    %v1690 = vunpack.c.l.b16 %v1017
    %v1691 = vunpack.c.h.b16 %v1017
    %v1692 = vunpack.c.l.b16 %v1018
    %v1693 = vunpack.c.h.b16 %v1018
    %v1694 = vunpack.c.l.b16 %v1019
    %v1695 = vunpack.c.h.b16 %v1019
    %v1696 = vunpack.c.l.b16 %v1020
    %v1697 = vunpack.c.h.b16 %v1020
    %v1698 = vunpack.c.l.b16 %v1021
    %v1699 = vunpack.c.h.b16 %v1021
    %v1700 = vunpack.c.l.b16 %v1022
    %v1701 = vunpack.c.h.b16 %v1022
    %v1702 = vunpack.c.l.b16 %v1023
    %v1703 = vunpack.c.h.b16 %v1023
    %v1704 = vunpack.c.l.b16 %v1024
    %v1705 = vunpack.c.h.b16 %v1024
    %v1706 = vunpack.c.l.b16 %v1025
    %v1707 = vunpack.c.h.b16 %v1025
    %v1708 = vunpack.c.l.b16 %v1026
    %v1709 = vunpack.c.h.b16 %v1026
    %v1710 = vunpack.c.l.b16 %v1027
    %v1711 = vunpack.c.h.b16 %v1027
    %v1712 = vunpack.c.l.b16 %v1028
    %v1713 = vunpack.c.h.b16 %v1028
    %v1714 = vunpack.c.l.b16 %v1029
    %v1715 = vunpack.c.h.b16 %v1029
    %v1716 = vunpack.c.l.b16 %v1030
    %v1717 = vunpack.c.h.b16 %v1030
    %v1718 = vunpack.c.l.b16 %v1031
    %v1719 = vunpack.c.h.b16 %v1031
    %v1720 = vunpack.c.l.b16 %v1032
    %v1721 = vunpack.c.h.b16 %v1032
    %v1722 = vunpack.c.l.b16 %v1033
    %v1723 = vunpack.c.h.b16 %v1033
    %v1724 = vunpack.c.l.b16 %v1034
    %v1725 = vunpack.c.h.b16 %v1034
    %v1726 = vunpack.c.l.b16 %v1035
    %v1727 = vunpack.c.h.b16 %v1035
    %v1728 = vunpack.c.l.b16 %v1036
    %v1729 = vunpack.c.h.b16 %v1036
    %v1730 = vunpack.c.l.b16 %v1037
    %v1731 = vunpack.c.h.b16 %v1037
    %v1732 = vunpack.c.l.b16 %v1038
    %v1733 = vunpack.c.h.b16 %v1038
    %v1734 = vunpack.c.l.b16 %v1039
    %v1735 = vunpack.c.h.b16 %v1039
    %v1736 = vunpack.c.l.b16 %v1040
    %v1737 = vunpack.c.h.b16 %v1040
    %v1738 = vunpack.c.l.b16 %v1041
    %v1739 = vunpack.c.h.b16 %v1041
    %v1740 = vunpack.c.l.b16 %v1042
    %v1741 = vunpack.c.h.b16 %v1042
    %v1742 = vunpack.c.l.b16 %v1043
    %v1743 = vunpack.c.h.b16 %v1043
    %v1744 = vunpack.c.l.b16 %v1044
    %v1745 = vunpack.c.h.b16 %v1044
    %v1746 = vunpack.c.l.b16 %v1045
    %v1747 = vunpack.c.h.b16 %v1045
    %v1748 = vunpack.c.l.b16 %v1046
    %v1749 = vunpack.c.h.b16 %v1046
    %v1750 = vunpack.c.l.b16 %v1047
    %v1751 = vunpack.c.h.b16 %v1047
    %v1752 = vunpack.c.l.b16 %v1048
    %v1753 = vunpack.c.h.b16 %v1048
    %v1754 = vunpack.c.l.b16 %v1049
    %v1755 = vunpack.c.h.b16 %v1049
    %v1756 = vunpack.c.l.b16 %v1050
    %v1757 = vunpack.c.h.b16 %v1050
    %v1758 = vunpack.c.l.b16 %v1051
    %v1759 = vunpack.c.h.b16 %v1051
    %v1760 = vunpack.c.l.b16 %v1052
    %v1761 = vunpack.c.h.b16 %v1052
    %v1762 = vunpack.c.l.b16 %v1053
    %v1763 = vunpack.c.h.b16 %v1053
    %v1764 = vunpack.c.l.b16 %v1054
    %v1765 = vunpack.c.h.b16 %v1054
    %v1766 = vunpack.c.l.b16 %v1055
    %v1767 = vunpack.c.h.b16 %v1055
    %v1768 = vunpack.c.l.b16 %v1056
    %v1769 = vunpack.c.h.b16 %v1056
    %v1770 = vunpack.c.l.b16 %v1057
    %v1771 = vunpack.c.h.b16 %v1057
    %v1772 = vunpack.c.l.b16 %v1058
    %v1773 = vunpack.c.h.b16 %v1058
    %v1774 = vpack.c.b16 %v1396, %v1390
    %v1775 = vpack.c.b16 %v1397, %v1391
    %v1776 = vpack.c.b16 %v1398, %v1392
    %v1777 = vpack.c.b16 %v1399, %v1393
    %v1778 = vpack.c.b16 %v1400, %v1394
    %v1779 = vpack.c.b16 %v1401, %v1395
    %v1780 = vpack.c.b16 %v1408, %v1402
    %v1781 = vpack.c.b16 %v1409, %v1403
    %v1782 = vpack.c.b16 %v1410, %v1404
    %v1783 = vpack.c.b16 %v1411, %v1405
    %v1784 = vpack.c.b16 %v1412, %v1406
    %v1785 = vpack.c.b16 %v1413, %v1407
    %v1786 = vpack.c.b16 %v1420, %v1414
    %v1787 = vpack.c.b16 %v1421, %v1415
    %v1788 = vpack.c.b16 %v1422, %v1416
    %v1789 = vpack.c.b16 %v1423, %v1417
    %v1790 = vpack.c.b16 %v1424, %v1418
    %v1791 = vpack.c.b16 %v1425, %v1419
    %v1792 = vpack.c.b16 %v1432, %v1426
    %v1793 = vpack.c.b16 %v1433, %v1427
    %v1794 = vpack.c.b16 %v1434, %v1428
    %v1795 = vpack.c.b16 %v1435, %v1429
    %v1796 = vpack.c.b16 %v1436, %v1430
    %v1797 = vpack.c.b16 %v1437, %v1431
    %v1798 = vpack.c.b16 %v1444, %v1438
    %v1799 = vpack.c.b16 %v1445, %v1439
    %v1800 = vpack.c.b16 %v1446, %v1440
    %v1801 = vpack.c.b16 %v1447, %v1441
    %v1802 = vpack.c.b16 %v1448, %v1442
    %v1803 = vpack.c.b16 %v1449, %v1443
    %v1804 = vpack.c.b16 %v1456, %v1450
    %v1805 = vpack.c.b16 %v1457, %v1451
    %v1806 = vpack.c.b16 %v1458, %v1452
    %v1807 = vpack.c.b16 %v1459, %v1453
    %v1808 = vpack.c.b16 %v1460, %v1454
    %v1809 = vpack.c.b16 %v1461, %v1455
    %v1810 = vpack.c.b16 %v1468, %v1462
    %v1811 = vpack.c.b16 %v1469, %v1463
    %v1812 = vpack.c.b16 %v1470, %v1464
    %v1813 = vpack.c.b16 %v1471, %v1465
    %v1814 = vpack.c.b16 %v1472, %v1466
    %v1815 = vpack.c.b16 %v1473, %v1467
    %v1816 = vpack.c.b16 %v1480, %v1474
    %v1817 = vpack.c.b16 %v1481, %v1475
    %v1818 = vpack.c.b16 %v1482, %v1476
    %v1819 = vpack.c.b16 %v1483, %v1477
    %v1820 = vpack.c.b16 %v1484, %v1478
    %v1821 = vpack.c.b16 %v1485, %v1479
    %v1822 = vpack.c.b16 %v1492, %v1486
    %v1823 = vpack.c.b16 %v1493, %v1487
    %v1824 = vpack.c.b16 %v1494, %v1488
    %v1825 = vpack.c.b16 %v1495, %v1489
    %v1826 = vpack.c.b16 %v1496, %v1490
    %v1827 = vpack.c.b16 %v1497, %v1491
    %v1828 = vpack.c.b16 %v1504, %v1498
    %v1829 = vpack.c.b16 %v1505, %v1499
    %v1830 = vpack.c.b16 %v1506, %v1500
    %v1831 = vpack.c.b16 %v1507, %v1501
    %v1832 = vpack.c.b16 %v1508, %v1502
    %v1833 = vpack.c.b16 %v1509, %v1503
    %v1834 = vpack.c.b16 %v1516, %v1510
    %v1835 = vpack.c.b16 %v1517, %v1511
    %v1836 = vpack.c.b16 %v1518, %v1512
    %v1837 = vpack.c.b16 %v1519, %v1513
    %v1838 = vpack.c.b16 %v1520, %v1514
    %v1839 = vpack.c.b16 %v1521, %v1515
    %v1840 = vpack.c.b16 %v1528, %v1522
    %v1841 = vpack.c.b16 %v1529, %v1523
    %v1842 = vpack.c.b16 %v1530, %v1524
    %v1843 = vpack.c.b16 %v1531, %v1525
    %v1844 = vpack.c.b16 %v1532, %v1526
    %v1845 = vpack.c.b16 %v1533, %v1527
    %v1846 = vpack.c.b16 %v1540, %v1534
    %v1847 = vpack.c.b16 %v1541, %v1535
    %v1848 = vpack.c.b16 %v1542, %v1536
    %v1849 = vpack.c.b16 %v1543, %v1537
    %v1850 = vpack.c.b16 %v1544, %v1538
    %v1851 = vpack.c.b16 %v1545, %v1539
    %v1852 = vpack.c.b16 %v1552, %v1546
    %v1853 = vpack.c.b16 %v1553, %v1547
    %v1854 = vpack.c.b16 %v1554, %v1548
    %v1855 = vpack.c.b16 %v1555, %v1549
    %v1856 = vpack.c.b16 %v1556, %v1550
    %v1857 = vpack.c.b16 %v1557, %v1551
    %v1858 = vpack.c.b16 %v1564, %v1558
    %v1859 = vpack.c.b16 %v1565, %v1559
    %v1860 = vpack.c.b16 %v1566, %v1560
    %v1861 = vpack.c.b16 %v1567, %v1561
    %v1862 = vpack.c.b16 %v1568, %v1562
    %v1863 = vpack.c.b16 %v1569, %v1563
    %v1864 = vpack.c.b16 %v1576, %v1570
    %v1865 = vpack.c.b16 %v1577, %v1571
    %v1866 = vpack.c.b16 %v1578, %v1572
    %v1867 = vpack.c.b16 %v1579, %v1573
    %v1868 = vpack.c.b16 %v1580, %v1574
    %v1869 = vpack.c.b16 %v1581, %v1575
    %v1870 = vpack.c.b16 %v1588, %v1582
    %v1871 = vpack.c.b16 %v1589, %v1583
    %v1872 = vpack.c.b16 %v1590, %v1584
    %v1873 = vpack.c.b16 %v1591, %v1585
    %v1874 = vpack.c.b16 %v1592, %v1586
    %v1875 = vpack.c.b16 %v1593, %v1587
    %v1876 = vpack.c.b16 %v1600, %v1594
    %v1877 = vpack.c.b16 %v1601, %v1595
    %v1878 = vpack.c.b16 %v1602, %v1596
    %v1879 = vpack.c.b16 %v1603, %v1597
    %v1880 = vpack.c.b16 %v1604, %v1598
    %v1881 = vpack.c.b16 %v1605, %v1599
    %v1882 = vpack.c.b16 %v1612, %v1606
    %v1883 = vpack.c.b16 %v1613, %v1607
    %v1884 = vpack.c.b16 %v1614, %v1608
    %v1885 = vpack.c.b16 %v1615, %v1609
    %v1886 = vpack.c.b16 %v1616, %v1610
    %v1887 = vpack.c.b16 %v1617, %v1611
    %v1888 = vpack.c.b16 %v1624, %v1618
    %v1889 = vpack.c.b16 %v1625, %v1619
    %v1890 = vpack.c.b16 %v1626, %v1620
    %v1891 = vpack.c.b16 %v1627, %v1621
    %v1892 = vpack.c.b16 %v1628, %v1622
    %v1893 = vpack.c.b16 %v1629, %v1623
    %v1894 = vpack.c.b16 %v1636, %v1630
    %v1895 = vpack.c.b16 %v1637, %v1631
    %v1896 = vpack.c.b16 %v1638, %v1632
    %v1897 = vpack.c.b16 %v1639, %v1633
    %v1898 = vpack.c.b16 %v1640, %v1634
    %v1899 = vpack.c.b16 %v1641, %v1635
    %v1900 = vpack.c.b16 %v1648, %v1642
    %v1901 = vpack.c.b16 %v1649, %v1643
    %v1902 = vpack.c.b16 %v1650, %v1644
    %v1903 = vpack.c.b16 %v1651, %v1645
    %v1904 = vpack.c.b16 %v1652, %v1646
    %v1905 = vpack.c.b16 %v1653, %v1647
    %v1906 = vpack.c.b16 %v1660, %v1654
    %v1907 = vpack.c.b16 %v1661, %v1655
    %v1908 = vpack.c.b16 %v1662, %v1656
    %v1909 = vpack.c.b16 %v1663, %v1657
    %v1910 = vpack.c.b16 %v1664, %v1658
    %v1911 = vpack.c.b16 %v1665, %v1659
    %v1912 = vpack.c.b16 %v1672, %v1666
    %v1913 = vpack.c.b16 %v1673, %v1667
    %v1914 = vpack.c.b16 %v1674, %v1668
    %v1915 = vpack.c.b16 %v1675, %v1669
    %v1916 = vpack.c.b16 %v1676, %v1670
    %v1917 = vpack.c.b16 %v1677, %v1671
    %v1918 = vpack.c.b16 %v1684, %v1678
    %v1919 = vpack.c.b16 %v1685, %v1679
    %v1920 = vpack.c.b16 %v1686, %v1680
    %v1921 = vpack.c.b16 %v1687, %v1681
    %v1922 = vpack.c.b16 %v1688, %v1682
    %v1923 = vpack.c.b16 %v1689, %v1683
    %v1924 = vpack.c.b16 %v1696, %v1690
    %v1925 = vpack.c.b16 %v1697, %v1691
    %v1926 = vpack.c.b16 %v1698, %v1692
    %v1927 = vpack.c.b16 %v1699, %v1693
    %v1928 = vpack.c.b16 %v1700, %v1694
    %v1929 = vpack.c.b16 %v1701, %v1695
    %v1930 = vpack.c.b16 %v1708, %v1702
    %v1931 = vpack.c.b16 %v1709, %v1703
    %v1932 = vpack.c.b16 %v1710, %v1704
    %v1933 = vpack.c.b16 %v1711, %v1705
    %v1934 = vpack.c.b16 %v1712, %v1706
    %v1935 = vpack.c.b16 %v1713, %v1707
    %v1936 = vpack.c.b16 %v1720, %v1714
    %v1937 = vpack.c.b16 %v1721, %v1715
    %v1938 = vpack.c.b16 %v1722, %v1716
    %v1939 = vpack.c.b16 %v1723, %v1717
    %v1940 = vpack.c.b16 %v1724, %v1718
    %v1941 = vpack.c.b16 %v1725, %v1719
    %v1942 = vpack.c.b16 %v1732, %v1726
    %v1943 = vpack.c.b16 %v1733, %v1727
    %v1944 = vpack.c.b16 %v1734, %v1728
    %v1945 = vpack.c.b16 %v1735, %v1729
    %v1946 = vpack.c.b16 %v1736, %v1730
    %v1947 = vpack.c.b16 %v1737, %v1731
    %v1948 = vpack.c.b16 %v1744, %v1738
    %v1949 = vpack.c.b16 %v1745, %v1739
    %v1950 = vpack.c.b16 %v1746, %v1740
    %v1951 = vpack.c.b16 %v1747, %v1741
    %v1952 = vpack.c.b16 %v1748, %v1742
    %v1953 = vpack.c.b16 %v1749, %v1743
    %v1954 = vpack.c.b16 %v1756, %v1750
    %v1955 = vpack.c.b16 %v1757, %v1751
    %v1956 = vpack.c.b16 %v1758, %v1752
    %v1957 = vpack.c.b16 %v1759, %v1753
    %v1958 = vpack.c.b16 %v1760, %v1754
    %v1959 = vpack.c.b16 %v1761, %v1755
    %v1960 = vpack.c.b16 %v1768, %v1762
    %v1961 = vpack.c.b16 %v1769, %v1763
    %v1962 = vpack.c.b16 %v1770, %v1764
    %v1963 = vpack.c.b16 %v1771, %v1765
    %v1964 = vpack.c.b16 %v1772, %v1766
    %v1965 = vpack.c.b16 %v1773, %v1767
    %2158 = vmatprep.subr.bf16.mxu0 %v1817
    %2159 = vmatpush1.bf16.msra.mxu0 %v1816
    %2160 = vmatprep.subr.bf16.mxu0 %v1811
    %2161 = vmatpush1.bf16.msra.mxu0 %v1810
    %2162 = vmatprep.subr.bf16.mxu0 %v1805
    %2163 = vmatpush1.bf16.msra.mxu0 %v1804
    %2164 = vmatprep.subr.bf16.mxu0 %v1799
    %2165 = vmatpush1.bf16.msra.mxu0 %v1798
    %2166 = vmatprep.subr.bf16.mxu0 %v1793
    %2167 = vmatpush1.bf16.msra.mxu0 %v1792
    %2168 = vmatprep.subr.bf16.mxu0 %v1787
    %2169 = vmatpush1.bf16.msra.mxu0 %v1786
    %2170 = vmatprep.subr.bf16.mxu0 %v1781
    %2171 = vmatpush1.bf16.msra.mxu0 %v1780
    %2172 = vmatprep.subr.bf16.mxu0 %v1775
    %2173 = vmatpush1.bf16.msra.mxu0 %v1774
    %2174 = vmatprep.subr.bf16.mxu0 %v1865
    %2175 = vmatpush2.bf16.msra.mxu0 %v1864
    %2176 = vmatprep.subr.bf16.mxu0 %v1859
    %2177 = vmatpush2.bf16.msra.mxu0 %v1858
    %2178 = vmatprep.subr.bf16.mxu0 %v1853
    %2179 = vmatpush2.bf16.msra.mxu0 %v1852
    %2180 = vmatprep.subr.bf16.mxu0 %v1847
    %2181 = vmatpush2.bf16.msra.mxu0 %v1846
    %2182 = vmatprep.subr.bf16.mxu0 %v1841
    %2183 = vmatpush2.bf16.msra.mxu0 %v1840
    %2184 = vmatprep.subr.bf16.mxu0 %v1835
    %2185 = vmatpush2.bf16.msra.mxu0 %v1834
    %2186 = vmatprep.subr.bf16.mxu0 %v1829
    %2187 = vmatpush2.bf16.msra.mxu0 %v1828
    %2188 = vmatprep.subr.bf16.mxu0 %v1823
    %2189 = vmatpush2.bf16.msra.mxu0 %v1822
    %2190 = vmatprep.mubr.bf16.mxu0 %v1191
    %2191 = vmatmul.mubr.bf16.gmra.mxu0 %v1190
    %v2192 = vpop.f32.mrf.mxu0
    %v2193 = vadd.f32 %v1064, %v2192
    %v2194 = vpop.f32.mrf.mxu0
    %v2195 = vadd.f32 %v1068, %v2194
    %v2196 = vpop.f32.mrf.mxu0
    %v2197 = vpop.f32.mrf.mxu0
    %2198 = vdwg.mxu0
    %2199 = vmatprep.subr.bf16.mxu0 %v1913
    %2200 = vmatpush1.bf16.msra.mxu0 %v1912
    %2201 = vmatprep.subr.bf16.mxu0 %v1907
    %2202 = vmatpush1.bf16.msra.mxu0 %v1906
    %2203 = vmatprep.subr.bf16.mxu0 %v1901
    %2204 = vmatpush1.bf16.msra.mxu0 %v1900
    %2205 = vmatprep.subr.bf16.mxu0 %v1895
    %2206 = vmatpush1.bf16.msra.mxu0 %v1894
    %2207 = vmatprep.subr.bf16.mxu0 %v1889
    %2208 = vmatpush1.bf16.msra.mxu0 %v1888
    %2209 = vmatprep.subr.bf16.mxu0 %v1883
    %2210 = vmatpush1.bf16.msra.mxu0 %v1882
    %2211 = vmatprep.subr.bf16.mxu0 %v1877
    %2212 = vmatpush1.bf16.msra.mxu0 %v1876
    %2213 = vmatprep.subr.bf16.mxu0 %v1871
    %2214 = vmatpush1.bf16.msra.mxu0 %v1870
    %2215 = vmatprep.subr.bf16.mxu0 %v1961
    %2216 = vmatpush2.bf16.msra.mxu0 %v1960
    %2217 = vmatprep.subr.bf16.mxu0 %v1955
    %2218 = vmatpush2.bf16.msra.mxu0 %v1954
    %2219 = vmatprep.subr.bf16.mxu0 %v1949
    %2220 = vmatpush2.bf16.msra.mxu0 %v1948
    %2221 = vmatprep.subr.bf16.mxu0 %v1943
    %2222 = vmatpush2.bf16.msra.mxu0 %v1942
    %2223 = vmatprep.subr.bf16.mxu0 %v1937
    %2224 = vmatpush2.bf16.msra.mxu0 %v1936
    %2225 = vmatprep.subr.bf16.mxu0 %v1931
    %2226 = vmatpush2.bf16.msra.mxu0 %v1930
    %2227 = vmatprep.subr.bf16.mxu0 %v1925
    %2228 = vmatpush2.bf16.msra.mxu0 %v1924
    %2229 = vmatprep.subr.bf16.mxu0 %v1919
    %2230 = vmatpush2.bf16.msra.mxu0 %v1918
    %2231 = vmatprep.mubr.bf16.mxu0 %v1193
    %2232 = vmatmul.mubr.bf16.gmra.mxu0 %v1192
    %v2233 = vpop.f32.mrf.mxu0
    %v2234 = vadd.f32 %v2193, %v2233
    %v2235 = vpop.f32.mrf.mxu0
    %v2236 = vadd.f32 %v2195, %v2235
    %v2237 = vpop.f32.mrf.mxu0
    %v2238 = vpop.f32.mrf.mxu0
    %2239 = vdwg.mxu0
    %2240 = vmatprep.subr.bf16.mxu0 %v1819
    %2241 = vmatpush1.bf16.msra.mxu0 %v1818
    %2242 = vmatprep.subr.bf16.mxu0 %v1813
    %2243 = vmatpush1.bf16.msra.mxu0 %v1812
    %2244 = vmatprep.subr.bf16.mxu0 %v1807
    %2245 = vmatpush1.bf16.msra.mxu0 %v1806
    %2246 = vmatprep.subr.bf16.mxu0 %v1801
    %2247 = vmatpush1.bf16.msra.mxu0 %v1800
    %2248 = vmatprep.subr.bf16.mxu0 %v1795
    %2249 = vmatpush1.bf16.msra.mxu0 %v1794
    %2250 = vmatprep.subr.bf16.mxu0 %v1789
    %2251 = vmatpush1.bf16.msra.mxu0 %v1788
    %2252 = vmatprep.subr.bf16.mxu0 %v1783
    %2253 = vmatpush1.bf16.msra.mxu0 %v1782
    %2254 = vmatprep.subr.bf16.mxu0 %v1777
    %2255 = vmatpush1.bf16.msra.mxu0 %v1776
    %2256 = vmatprep.subr.bf16.mxu0 %v1867
    %2257 = vmatpush2.bf16.msra.mxu0 %v1866
    %2258 = vmatprep.subr.bf16.mxu0 %v1861
    %2259 = vmatpush2.bf16.msra.mxu0 %v1860
    %2260 = vmatprep.subr.bf16.mxu0 %v1855
    %2261 = vmatpush2.bf16.msra.mxu0 %v1854
    %2262 = vmatprep.subr.bf16.mxu0 %v1849
    %2263 = vmatpush2.bf16.msra.mxu0 %v1848
    %2264 = vmatprep.subr.bf16.mxu0 %v1843
    %2265 = vmatpush2.bf16.msra.mxu0 %v1842
    %2266 = vmatprep.subr.bf16.mxu0 %v1837
    %2267 = vmatpush2.bf16.msra.mxu0 %v1836
    %2268 = vmatprep.subr.bf16.mxu0 %v1831
    %2269 = vmatpush2.bf16.msra.mxu0 %v1830
    %2270 = vmatprep.subr.bf16.mxu0 %v1825
    %2271 = vmatpush2.bf16.msra.mxu0 %v1824
    %2272 = vmatprep.mubr.bf16.mxu0 %v1191
    %2273 = vmatmul.mubr.bf16.gmra.mxu0 %v1190
    %v2274 = vpop.f32.mrf.mxu0
    %v2275 = vadd.f32 %v1072, %v2274
    %v2276 = vpop.f32.mrf.mxu0
    %v2277 = vadd.f32 %v1076, %v2276
    %v2278 = vpop.f32.mrf.mxu0
    %v2279 = vpop.f32.mrf.mxu0
    %2280 = vdwg.mxu0
    %2281 = vmatprep.subr.bf16.mxu0 %v1915
    %2282 = vmatpush1.bf16.msra.mxu0 %v1914
    %2283 = vmatprep.subr.bf16.mxu0 %v1909
    %2284 = vmatpush1.bf16.msra.mxu0 %v1908
    %2285 = vmatprep.subr.bf16.mxu0 %v1903
    %2286 = vmatpush1.bf16.msra.mxu0 %v1902
    %2287 = vmatprep.subr.bf16.mxu0 %v1897
    %2288 = vmatpush1.bf16.msra.mxu0 %v1896
    %2289 = vmatprep.subr.bf16.mxu0 %v1891
    %2290 = vmatpush1.bf16.msra.mxu0 %v1890
    %2291 = vmatprep.subr.bf16.mxu0 %v1885
    %2292 = vmatpush1.bf16.msra.mxu0 %v1884
    %2293 = vmatprep.subr.bf16.mxu0 %v1879
    %2294 = vmatpush1.bf16.msra.mxu0 %v1878
    %2295 = vmatprep.subr.bf16.mxu0 %v1873
    %2296 = vmatpush1.bf16.msra.mxu0 %v1872
    %2297 = vmatprep.subr.bf16.mxu0 %v1963
    %2298 = vmatpush2.bf16.msra.mxu0 %v1962
    %2299 = vmatprep.subr.bf16.mxu0 %v1957
    %2300 = vmatpush2.bf16.msra.mxu0 %v1956
    %2301 = vmatprep.subr.bf16.mxu0 %v1951
    %2302 = vmatpush2.bf16.msra.mxu0 %v1950
    %2303 = vmatprep.subr.bf16.mxu0 %v1945
    %2304 = vmatpush2.bf16.msra.mxu0 %v1944
    %2305 = vmatprep.subr.bf16.mxu0 %v1939
    %2306 = vmatpush2.bf16.msra.mxu0 %v1938
    %2307 = vmatprep.subr.bf16.mxu0 %v1933
    %2308 = vmatpush2.bf16.msra.mxu0 %v1932
    %2309 = vmatprep.subr.bf16.mxu0 %v1927
    %2310 = vmatpush2.bf16.msra.mxu0 %v1926
    %2311 = vmatprep.subr.bf16.mxu0 %v1921
    %2312 = vmatpush2.bf16.msra.mxu0 %v1920
    %2313 = vmatprep.mubr.bf16.mxu0 %v1193
    %2314 = vmatmul.mubr.bf16.gmra.mxu0 %v1192
    %v2315 = vpop.f32.mrf.mxu0
    %v2316 = vadd.f32 %v2275, %v2315
    %v2317 = vpop.f32.mrf.mxu0
    %v2318 = vadd.f32 %v2277, %v2317
    %v2319 = vpop.f32.mrf.mxu0
    %v2320 = vpop.f32.mrf.mxu0
    %2321 = vdwg.mxu0
    %2322 = vmatprep.subr.bf16.mxu0 %v1821
    %2323 = vmatpush1.bf16.msra.mxu0 %v1820
    %2324 = vmatprep.subr.bf16.mxu0 %v1815
    %2325 = vmatpush1.bf16.msra.mxu0 %v1814
    %2326 = vmatprep.subr.bf16.mxu0 %v1809
    %2327 = vmatpush1.bf16.msra.mxu0 %v1808
    %2328 = vmatprep.subr.bf16.mxu0 %v1803
    %2329 = vmatpush1.bf16.msra.mxu0 %v1802
    %2330 = vmatprep.subr.bf16.mxu0 %v1797
    %2331 = vmatpush1.bf16.msra.mxu0 %v1796
    %2332 = vmatprep.subr.bf16.mxu0 %v1791
    %2333 = vmatpush1.bf16.msra.mxu0 %v1790
    %2334 = vmatprep.subr.bf16.mxu0 %v1785
    %2335 = vmatpush1.bf16.msra.mxu0 %v1784
    %2336 = vmatprep.subr.bf16.mxu0 %v1779
    %2337 = vmatpush1.bf16.msra.mxu0 %v1778
    %2338 = vmatprep.subr.bf16.mxu0 %v1869
    %2339 = vmatpush2.bf16.msra.mxu0 %v1868
    %2340 = vmatprep.subr.bf16.mxu0 %v1863
    %2341 = vmatpush2.bf16.msra.mxu0 %v1862
    %2342 = vmatprep.subr.bf16.mxu0 %v1857
    %2343 = vmatpush2.bf16.msra.mxu0 %v1856
    %2344 = vmatprep.subr.bf16.mxu0 %v1851
    %2345 = vmatpush2.bf16.msra.mxu0 %v1850
    %2346 = vmatprep.subr.bf16.mxu0 %v1845
    %2347 = vmatpush2.bf16.msra.mxu0 %v1844
    %2348 = vmatprep.subr.bf16.mxu0 %v1839
    %2349 = vmatpush2.bf16.msra.mxu0 %v1838
    %2350 = vmatprep.subr.bf16.mxu0 %v1833
    %2351 = vmatpush2.bf16.msra.mxu0 %v1832
    %2352 = vmatprep.subr.bf16.mxu0 %v1827
    %2353 = vmatpush2.bf16.msra.mxu0 %v1826
    %2354 = vmatprep.mubr.bf16.mxu0 %v1191
    %2355 = vmatmul.mubr.bf16.gmra.mxu0 %v1190
    %v2356 = vpop.f32.mrf.mxu0
    %v2357 = vadd.f32 %v1080, %v2356
    %v2358 = vpop.f32.mrf.mxu0
    %v2359 = vadd.f32 %v1084, %v2358
    %v2360 = vpop.f32.mrf.mxu0
    %v2361 = vpop.f32.mrf.mxu0
    %2362 = vdwg.mxu0
    %2363 = vmatprep.subr.bf16.mxu0 %v1917
    %2364 = vmatpush1.bf16.msra.mxu0 %v1916
    %2365 = vmatprep.subr.bf16.mxu0 %v1911
    %2366 = vmatpush1.bf16.msra.mxu0 %v1910
    %2367 = vmatprep.subr.bf16.mxu0 %v1905
    %2368 = vmatpush1.bf16.msra.mxu0 %v1904
    %2369 = vmatprep.subr.bf16.mxu0 %v1899
    %2370 = vmatpush1.bf16.msra.mxu0 %v1898
    %2371 = vmatprep.subr.bf16.mxu0 %v1893
    %2372 = vmatpush1.bf16.msra.mxu0 %v1892
    %2373 = vmatprep.subr.bf16.mxu0 %v1887
    %2374 = vmatpush1.bf16.msra.mxu0 %v1886
    %2375 = vmatprep.subr.bf16.mxu0 %v1881
    %2376 = vmatpush1.bf16.msra.mxu0 %v1880
    %2377 = vmatprep.subr.bf16.mxu0 %v1875
    %2378 = vmatpush1.bf16.msra.mxu0 %v1874
    %2379 = vmatprep.subr.bf16.mxu0 %v1965
    %2380 = vmatpush2.bf16.msra.mxu0 %v1964
    %2381 = vmatprep.subr.bf16.mxu0 %v1959
    %2382 = vmatpush2.bf16.msra.mxu0 %v1958
    %2383 = vmatprep.subr.bf16.mxu0 %v1953
    %2384 = vmatpush2.bf16.msra.mxu0 %v1952
    %2385 = vmatprep.subr.bf16.mxu0 %v1947
    %2386 = vmatpush2.bf16.msra.mxu0 %v1946
    %2387 = vmatprep.subr.bf16.mxu0 %v1941
    %2388 = vmatpush2.bf16.msra.mxu0 %v1940
    %2389 = vmatprep.subr.bf16.mxu0 %v1935
    %2390 = vmatpush2.bf16.msra.mxu0 %v1934
    %2391 = vmatprep.subr.bf16.mxu0 %v1929
    %2392 = vmatpush2.bf16.msra.mxu0 %v1928
    %2393 = vmatprep.subr.bf16.mxu0 %v1923
    %2394 = vmatpush2.bf16.msra.mxu0 %v1922
    %2395 = vmatprep.mubr.bf16.mxu0 %v1193
    %2396 = vmatmul.mubr.bf16.gmra.mxu0 %v1192
    %v2397 = vpop.f32.mrf.mxu0
    %v2398 = vadd.f32 %v2357, %v2397
    %v2399 = vpop.f32.mrf.mxu0
    %v2400 = vadd.f32 %v2359, %v2399
    %v2401 = vpop.f32.mrf.mxu0
    %v2402 = vpop.f32.mrf.mxu0
    %2403 = vdwg.mxu0
    %vm2404 = vcmp.gt.f32.partialorder %v2234, 0.0
    %vm2405 = vcmp.gt.f32.partialorder %v2236, 0.0
    %vm2406 = vcmp.gt.f32.partialorder %v2316, 0.0
    %vm2407 = vcmp.gt.f32.partialorder %v2318, 0.0
    %vm2408 = vcmp.gt.f32.partialorder %v2398, 0.0
    %vm2409 = vcmp.gt.f32.partialorder %v2400, 0.0
    %v2410 = vmul.f32 %v2234, 0.2
    %v2411 = vmul.f32 %v2236, 0.2
    %v2412 = vmul.f32 %v2316, 0.2
    %v2413 = vmul.f32 %v2318, 0.2
    %v2414 = vmul.f32 %v2398, 0.2
    %v2415 = vmul.f32 %v2400, 0.2
    %v2416 = vsel %vm2404, %v2234, %v2410
    %v2417 = vsel %vm2405, %v2236, %v2411
    %v2418 = vsel %vm2406, %v2316, %v2412
    %v2419 = vsel %vm2407, %v2318, %v2413
    %v2420 = vsel %vm2408, %v2398, %v2414
    %v2421 = vsel %vm2409, %v2400, %v2415
    %v2422 = vpack.c.bf16 %v2416, %v2416
    %v2423 = vpack.c.bf16 %v2417, %v2417
    %v2424 = vpack.c.bf16 %v2418, %v2418
    %v2425 = vpack.c.bf16 %v2419, %v2419
    %v2426 = vpack.c.bf16 %v2420, %v2420
    %v2427 = vpack.c.bf16 %v2421, %v2421
    %v2428 = vld [vmem:[#allocation11] sm:$0xff]
    %v2429 = vld [vmem:[#allocation11 + $0x8] sm:$0xff]
    %v2430 = vld [vmem:[#allocation11 + $0x10] sm:$0xff]
    %v2431 = vld [vmem:[#allocation11 + $0x18] sm:$0xff]
    %v2432 = vld [vmem:[#allocation11 + $0x20] sm:$0xff]
    %v2433 = vld [vmem:[#allocation11 + $0x28] sm:$0xff]
    %v2434 = vld [vmem:[#allocation11 + $0x30] sm:$0xff]
    %v2435 = vld [vmem:[#allocation11 + $0x38] sm:$0xff]
    %v2436 = vld [vmem:[#allocation11 + $0x40] sm:$0xff]
    %v2437 = vld [vmem:[#allocation11 + $0x48] sm:$0xff]
    %v2438 = vld [vmem:[#allocation11 + $0x50] sm:$0xff]
    %v2439 = vld [vmem:[#allocation11 + $0x58] sm:$0xff]
    %v2440 = vld [vmem:[#allocation11 + $0x60] sm:$0xff]
    %v2441 = vld [vmem:[#allocation11 + $0x68] sm:$0xff]
    %v2442 = vld [vmem:[#allocation11 + $0x70] sm:$0xff]
    %v2443 = vld [vmem:[#allocation11 + $0x78] sm:$0xff]
    %v2444 = vld [vmem:[#allocation11 + $0x80] sm:$0xff]
    %v2445 = vld [vmem:[#allocation11 + $0x88] sm:$0xff]
    %v2446 = vld [vmem:[#allocation11 + $0x90] sm:$0xff]
    %v2447 = vld [vmem:[#allocation11 + $0x98] sm:$0xff]
    %v2448 = vld [vmem:[#allocation11 + $0xa0] sm:$0xff]
    %v2449 = vld [vmem:[#allocation11 + $0xa8] sm:$0xff]
    %v2450 = vld [vmem:[#allocation11 + $0xb0] sm:$0xff]
    %v2451 = vld [vmem:[#allocation11 + $0xb8] sm:$0xff]
    %v2452 = vld [vmem:[#allocation11 + $0xc0] sm:$0xff]
    %v2453 = vld [vmem:[#allocation11 + $0xc8] sm:$0xff]
    %v2454 = vld [vmem:[#allocation11 + $0xd0] sm:$0xff]
    %v2455 = vld [vmem:[#allocation11 + $0xd8] sm:$0xff]
    %v2456 = vld [vmem:[#allocation11 + $0xe0] sm:$0xff]
    %v2457 = vld [vmem:[#allocation11 + $0xe8] sm:$0xff]
    %v2458 = vld [vmem:[#allocation11 + $0xf0] sm:$0xff]
    %v2459 = vld [vmem:[#allocation11 + $0xf8] sm:$0xff]
    %v2460 = vld [vmem:[#allocation11 + $0x100] sm:$0xff]
    %v2461 = vld [vmem:[#allocation11 + $0x108] sm:$0xff]
    %v2462 = vld [vmem:[#allocation11 + $0x110] sm:$0xff]
    %v2463 = vld [vmem:[#allocation11 + $0x118] sm:$0xff]
    %v2464 = vld [vmem:[#allocation11 + $0x120] sm:$0xff]
    %v2465 = vld [vmem:[#allocation11 + $0x128] sm:$0xff]
    %v2466 = vld [vmem:[#allocation11 + $0x130] sm:$0xff]
    %v2467 = vld [vmem:[#allocation11 + $0x138] sm:$0xff]
    %v2468 = vld [vmem:[#allocation11 + $0x140] sm:$0xff]
    %v2469 = vld [vmem:[#allocation11 + $0x148] sm:$0xff]
    %v2470 = vld [vmem:[#allocation11 + $0x150] sm:$0xff]
    %v2471 = vld [vmem:[#allocation11 + $0x158] sm:$0xff]
    %v2472 = vld [vmem:[#allocation11 + $0x160] sm:$0xff]
    %v2473 = vld [vmem:[#allocation11 + $0x168] sm:$0xff]
    %v2474 = vld [vmem:[#allocation11 + $0x170] sm:$0xff]
    %v2475 = vld [vmem:[#allocation11 + $0x178] sm:$0xff]
    %v2476 = vld [vmem:[#allocation11 + $0x180] sm:$0xff]
    %v2477 = vld [vmem:[#allocation11 + $0x188] sm:$0xff]
    %v2478 = vld [vmem:[#allocation11 + $0x190] sm:$0xff]
    %v2479 = vld [vmem:[#allocation11 + $0x198] sm:$0xff]
    %v2480 = vld [vmem:[#allocation11 + $0x1a0] sm:$0xff]
    %v2481 = vld [vmem:[#allocation11 + $0x1a8] sm:$0xff]
    %v2482 = vld [vmem:[#allocation11 + $0x1b0] sm:$0xff]
    %v2483 = vld [vmem:[#allocation11 + $0x1b8] sm:$0xff]
    %v2484 = vld [vmem:[#allocation11 + $0x1c0] sm:$0xff]
    %v2485 = vld [vmem:[#allocation11 + $0x1c8] sm:$0xff]
    %v2486 = vld [vmem:[#allocation11 + $0x1d0] sm:$0xff]
    %v2487 = vld [vmem:[#allocation11 + $0x1d8] sm:$0xff]
    %v2488 = vld [vmem:[#allocation11 + $0x1e0] sm:$0xff]
    %v2489 = vld [vmem:[#allocation11 + $0x1e8] sm:$0xff]
    %v2490 = vld [vmem:[#allocation11 + $0x1f0] sm:$0xff]
    %v2491 = vld [vmem:[#allocation11 + $0x1f8] sm:$0xff]
    %v2492 = vld [vmem:[#allocation11 + $0x200] sm:$0xff]
    %v2493 = vld [vmem:[#allocation11 + $0x208] sm:$0xff]
    %v2494 = vld [vmem:[#allocation11 + $0x210] sm:$0xff]
    %v2495 = vld [vmem:[#allocation11 + $0x218] sm:$0xff]
    %v2496 = vld [vmem:[#allocation11 + $0x220] sm:$0xff]
    %v2497 = vld [vmem:[#allocation11 + $0x228] sm:$0xff]
    %v2498 = vld [vmem:[#allocation11 + $0x230] sm:$0xff]
    %v2499 = vld [vmem:[#allocation11 + $0x238] sm:$0xff]
    %v2500 = vld [vmem:[#allocation11 + $0x240] sm:$0xff]
    %v2501 = vld [vmem:[#allocation11 + $0x248] sm:$0xff]
    %v2502 = vld [vmem:[#allocation11 + $0x250] sm:$0xff]
    %v2503 = vld [vmem:[#allocation11 + $0x258] sm:$0xff]
    %v2504 = vld [vmem:[#allocation11 + $0x260] sm:$0xff]
    %v2505 = vld [vmem:[#allocation11 + $0x268] sm:$0xff]
    %v2506 = vld [vmem:[#allocation11 + $0x270] sm:$0xff]
    %v2507 = vld [vmem:[#allocation11 + $0x278] sm:$0xff]
    %v2508 = vld [vmem:[#allocation11 + $0x280] sm:$0xff]
    %v2509 = vld [vmem:[#allocation11 + $0x288] sm:$0xff]
    %v2510 = vld [vmem:[#allocation11 + $0x290] sm:$0xff]
    %v2511 = vld [vmem:[#allocation11 + $0x298] sm:$0xff]
    %v2512 = vld [vmem:[#allocation11 + $0x2a0] sm:$0xff]
    %v2513 = vld [vmem:[#allocation11 + $0x2a8] sm:$0xff]
    %v2514 = vld [vmem:[#allocation11 + $0x2b0] sm:$0xff]
    %v2515 = vld [vmem:[#allocation11 + $0x2b8] sm:$0xff]
    %v2516 = vld [vmem:[#allocation11 + $0x2c0] sm:$0xff]
    %v2517 = vld [vmem:[#allocation11 + $0x2c8] sm:$0xff]
    %v2518 = vld [vmem:[#allocation11 + $0x2d0] sm:$0xff]
    %v2519 = vld [vmem:[#allocation11 + $0x2d8] sm:$0xff]
    %v2520 = vld [vmem:[#allocation11 + $0x2e0] sm:$0xff]
    %v2521 = vld [vmem:[#allocation11 + $0x2e8] sm:$0xff]
    %v2522 = vld [vmem:[#allocation11 + $0x2f0] sm:$0xff]
    %v2523 = vld [vmem:[#allocation11 + $0x2f8] sm:$0xff]
    %v2524 = vld [vmem:[%s6] sm:$0x3]
    %v2526 = vlaneseq
    %v2527 = vshrl.u32 %v2526, 7
    %v2528 = vsub.s32 0, %v2527
    %v2529 = vrot.slane %v2524, %v2528
    %v2530 = vlaneseq
    %v2531 = vshrl.u32 %v2530, 7
    %v2532 = vsub.s32 1, %v2531
    %v2533 = vrot.slane %v2524, %v2532
    %v2632 = vunpack.c.l.b16 %v2428
    %v2633 = vunpack.c.h.b16 %v2428
    %v2634 = vunpack.c.l.b16 %v2429
    %v2635 = vunpack.c.h.b16 %v2429
    %v2636 = vunpack.c.l.b16 %v2430
    %v2637 = vunpack.c.h.b16 %v2430
    %v2638 = vunpack.c.l.b16 %v2431
    %v2639 = vunpack.c.h.b16 %v2431
    %v2640 = vunpack.c.l.b16 %v2432
    %v2641 = vunpack.c.h.b16 %v2432
    %v2642 = vunpack.c.l.b16 %v2433
    %v2643 = vunpack.c.h.b16 %v2433
    %v2644 = vunpack.c.l.b16 %v2434
    %v2645 = vunpack.c.h.b16 %v2434
    %v2646 = vunpack.c.l.b16 %v2435
    %v2647 = vunpack.c.h.b16 %v2435
    %v2648 = vunpack.c.l.b16 %v2436
    %v2649 = vunpack.c.h.b16 %v2436
    %v2650 = vunpack.c.l.b16 %v2437
    %v2651 = vunpack.c.h.b16 %v2437
    %v2652 = vunpack.c.l.b16 %v2438
    %v2653 = vunpack.c.h.b16 %v2438
    %v2654 = vunpack.c.l.b16 %v2439
    %v2655 = vunpack.c.h.b16 %v2439
    %v2656 = vunpack.c.l.b16 %v2440
    %v2657 = vunpack.c.h.b16 %v2440
    %v2658 = vunpack.c.l.b16 %v2441
    %v2659 = vunpack.c.h.b16 %v2441
    %v2660 = vunpack.c.l.b16 %v2442
    %v2661 = vunpack.c.h.b16 %v2442
    %v2662 = vunpack.c.l.b16 %v2443
    %v2663 = vunpack.c.h.b16 %v2443
    %v2664 = vunpack.c.l.b16 %v2444
    %v2665 = vunpack.c.h.b16 %v2444
    %v2666 = vunpack.c.l.b16 %v2445
    %v2667 = vunpack.c.h.b16 %v2445
    %v2668 = vunpack.c.l.b16 %v2446
    %v2669 = vunpack.c.h.b16 %v2446
    %v2670 = vunpack.c.l.b16 %v2447
    %v2671 = vunpack.c.h.b16 %v2447
    %v2672 = vunpack.c.l.b16 %v2448
    %v2673 = vunpack.c.h.b16 %v2448
    %v2674 = vunpack.c.l.b16 %v2449
    %v2675 = vunpack.c.h.b16 %v2449
    %v2676 = vunpack.c.l.b16 %v2450
    %v2677 = vunpack.c.h.b16 %v2450
    %v2678 = vunpack.c.l.b16 %v2451
    %v2679 = vunpack.c.h.b16 %v2451
    %v2680 = vunpack.c.l.b16 %v2452
    %v2681 = vunpack.c.h.b16 %v2452
    %v2682 = vunpack.c.l.b16 %v2453
    %v2683 = vunpack.c.h.b16 %v2453
    %v2684 = vunpack.c.l.b16 %v2454
    %v2685 = vunpack.c.h.b16 %v2454
    %v2686 = vunpack.c.l.b16 %v2455
    %v2687 = vunpack.c.h.b16 %v2455
    %v2688 = vunpack.c.l.b16 %v2456
    %v2689 = vunpack.c.h.b16 %v2456
    %v2690 = vunpack.c.l.b16 %v2457
    %v2691 = vunpack.c.h.b16 %v2457
    %v2692 = vunpack.c.l.b16 %v2458
    %v2693 = vunpack.c.h.b16 %v2458
    %v2694 = vunpack.c.l.b16 %v2459
    %v2695 = vunpack.c.h.b16 %v2459
    %v2696 = vunpack.c.l.b16 %v2460
    %v2697 = vunpack.c.h.b16 %v2460
    %v2698 = vunpack.c.l.b16 %v2461
    %v2699 = vunpack.c.h.b16 %v2461
    %v2700 = vunpack.c.l.b16 %v2462
    %v2701 = vunpack.c.h.b16 %v2462
    %v2702 = vunpack.c.l.b16 %v2463
    %v2703 = vunpack.c.h.b16 %v2463
    %v2704 = vunpack.c.l.b16 %v2464
    %v2705 = vunpack.c.h.b16 %v2464
    %v2706 = vunpack.c.l.b16 %v2465
    %v2707 = vunpack.c.h.b16 %v2465
    %v2708 = vunpack.c.l.b16 %v2466
    %v2709 = vunpack.c.h.b16 %v2466
    %v2710 = vunpack.c.l.b16 %v2467
    %v2711 = vunpack.c.h.b16 %v2467
    %v2712 = vunpack.c.l.b16 %v2468
    %v2713 = vunpack.c.h.b16 %v2468
    %v2714 = vunpack.c.l.b16 %v2469
    %v2715 = vunpack.c.h.b16 %v2469
    %v2716 = vunpack.c.l.b16 %v2470
    %v2717 = vunpack.c.h.b16 %v2470
    %v2718 = vunpack.c.l.b16 %v2471
    %v2719 = vunpack.c.h.b16 %v2471
    %v2720 = vunpack.c.l.b16 %v2472
    %v2721 = vunpack.c.h.b16 %v2472
    %v2722 = vunpack.c.l.b16 %v2473
    %v2723 = vunpack.c.h.b16 %v2473
    %v2724 = vunpack.c.l.b16 %v2474
    %v2725 = vunpack.c.h.b16 %v2474
    %v2726 = vunpack.c.l.b16 %v2475
    %v2727 = vunpack.c.h.b16 %v2475
    %v2728 = vunpack.c.l.b16 %v2476
    %v2729 = vunpack.c.h.b16 %v2476
    %v2730 = vunpack.c.l.b16 %v2477
    %v2731 = vunpack.c.h.b16 %v2477
    %v2732 = vunpack.c.l.b16 %v2478
    %v2733 = vunpack.c.h.b16 %v2478
    %v2734 = vunpack.c.l.b16 %v2479
    %v2735 = vunpack.c.h.b16 %v2479
    %v2736 = vunpack.c.l.b16 %v2480
    %v2737 = vunpack.c.h.b16 %v2480
    %v2738 = vunpack.c.l.b16 %v2481
    %v2739 = vunpack.c.h.b16 %v2481
    %v2740 = vunpack.c.l.b16 %v2482
    %v2741 = vunpack.c.h.b16 %v2482
    %v2742 = vunpack.c.l.b16 %v2483
    %v2743 = vunpack.c.h.b16 %v2483
    %v2744 = vunpack.c.l.b16 %v2484
    %v2745 = vunpack.c.h.b16 %v2484
    %v2746 = vunpack.c.l.b16 %v2485
    %v2747 = vunpack.c.h.b16 %v2485
    %v2748 = vunpack.c.l.b16 %v2486
    %v2749 = vunpack.c.h.b16 %v2486
    %v2750 = vunpack.c.l.b16 %v2487
    %v2751 = vunpack.c.h.b16 %v2487
    %v2752 = vunpack.c.l.b16 %v2488
    %v2753 = vunpack.c.h.b16 %v2488
    %v2754 = vunpack.c.l.b16 %v2489
    %v2755 = vunpack.c.h.b16 %v2489
    %v2756 = vunpack.c.l.b16 %v2490
    %v2757 = vunpack.c.h.b16 %v2490
    %v2758 = vunpack.c.l.b16 %v2491
    %v2759 = vunpack.c.h.b16 %v2491
    %v2760 = vunpack.c.l.b16 %v2492
    %v2761 = vunpack.c.h.b16 %v2492
    %v2762 = vunpack.c.l.b16 %v2493
    %v2763 = vunpack.c.h.b16 %v2493
    %v2764 = vunpack.c.l.b16 %v2494
    %v2765 = vunpack.c.h.b16 %v2494
    %v2766 = vunpack.c.l.b16 %v2495
    %v2767 = vunpack.c.h.b16 %v2495
    %v2768 = vunpack.c.l.b16 %v2496
    %v2769 = vunpack.c.h.b16 %v2496
    %v2770 = vunpack.c.l.b16 %v2497
    %v2771 = vunpack.c.h.b16 %v2497
    %v2772 = vunpack.c.l.b16 %v2498
    %v2773 = vunpack.c.h.b16 %v2498
    %v2774 = vunpack.c.l.b16 %v2499
    %v2775 = vunpack.c.h.b16 %v2499
    %v2776 = vunpack.c.l.b16 %v2500
    %v2777 = vunpack.c.h.b16 %v2500
    %v2778 = vunpack.c.l.b16 %v2501
    %v2779 = vunpack.c.h.b16 %v2501
    %v2780 = vunpack.c.l.b16 %v2502
    %v2781 = vunpack.c.h.b16 %v2502
    %v2782 = vunpack.c.l.b16 %v2503
    %v2783 = vunpack.c.h.b16 %v2503
    %v2784 = vunpack.c.l.b16 %v2504
    %v2785 = vunpack.c.h.b16 %v2504
    %v2786 = vunpack.c.l.b16 %v2505
    %v2787 = vunpack.c.h.b16 %v2505
    %v2788 = vunpack.c.l.b16 %v2506
    %v2789 = vunpack.c.h.b16 %v2506
    %v2790 = vunpack.c.l.b16 %v2507
    %v2791 = vunpack.c.h.b16 %v2507
    %v2792 = vunpack.c.l.b16 %v2508
    %v2793 = vunpack.c.h.b16 %v2508
    %v2794 = vunpack.c.l.b16 %v2509
    %v2795 = vunpack.c.h.b16 %v2509
    %v2796 = vunpack.c.l.b16 %v2510
    %v2797 = vunpack.c.h.b16 %v2510
    %v2798 = vunpack.c.l.b16 %v2511
    %v2799 = vunpack.c.h.b16 %v2511
    %v2800 = vunpack.c.l.b16 %v2512
    %v2801 = vunpack.c.h.b16 %v2512
    %v2802 = vunpack.c.l.b16 %v2513
    %v2803 = vunpack.c.h.b16 %v2513
    %v2804 = vunpack.c.l.b16 %v2514
    %v2805 = vunpack.c.h.b16 %v2514
    %v2806 = vunpack.c.l.b16 %v2515
    %v2807 = vunpack.c.h.b16 %v2515
    %v2808 = vunpack.c.l.b16 %v2516
    %v2809 = vunpack.c.h.b16 %v2516
    %v2810 = vunpack.c.l.b16 %v2517
    %v2811 = vunpack.c.h.b16 %v2517
    %v2812 = vunpack.c.l.b16 %v2518
    %v2813 = vunpack.c.h.b16 %v2518
    %v2814 = vunpack.c.l.b16 %v2519
    %v2815 = vunpack.c.h.b16 %v2519
    %v2816 = vunpack.c.l.b16 %v2520
    %v2817 = vunpack.c.h.b16 %v2520
    %v2818 = vunpack.c.l.b16 %v2521
    %v2819 = vunpack.c.h.b16 %v2521
    %v2820 = vunpack.c.l.b16 %v2522
    %v2821 = vunpack.c.h.b16 %v2522
    %v2822 = vunpack.c.l.b16 %v2523
    %v2823 = vunpack.c.h.b16 %v2523
    %v2824 = vpack.c.b16 %v2634, %v2632
    %v2825 = vpack.c.b16 %v2635, %v2633
    %v2826 = vpack.c.b16 %v2638, %v2636
    %v2827 = vpack.c.b16 %v2639, %v2637
    %v2828 = vpack.c.b16 %v2642, %v2640
    %v2829 = vpack.c.b16 %v2643, %v2641
    %v2830 = vpack.c.b16 %v2646, %v2644
    %v2831 = vpack.c.b16 %v2647, %v2645
    %v2832 = vpack.c.b16 %v2650, %v2648
    %v2833 = vpack.c.b16 %v2651, %v2649
    %v2834 = vpack.c.b16 %v2654, %v2652
    %v2835 = vpack.c.b16 %v2655, %v2653
    %v2836 = vpack.c.b16 %v2658, %v2656
    %v2837 = vpack.c.b16 %v2659, %v2657
    %v2838 = vpack.c.b16 %v2662, %v2660
    %v2839 = vpack.c.b16 %v2663, %v2661
    %v2840 = vpack.c.b16 %v2666, %v2664
    %v2841 = vpack.c.b16 %v2667, %v2665
    %v2842 = vpack.c.b16 %v2670, %v2668
    %v2843 = vpack.c.b16 %v2671, %v2669
    %v2844 = vpack.c.b16 %v2674, %v2672
    %v2845 = vpack.c.b16 %v2675, %v2673
    %v2846 = vpack.c.b16 %v2678, %v2676
    %v2847 = vpack.c.b16 %v2679, %v2677
    %v2848 = vpack.c.b16 %v2682, %v2680
    %v2849 = vpack.c.b16 %v2683, %v2681
    %v2850 = vpack.c.b16 %v2686, %v2684
    %v2851 = vpack.c.b16 %v2687, %v2685
    %v2852 = vpack.c.b16 %v2690, %v2688
    %v2853 = vpack.c.b16 %v2691, %v2689
    %v2854 = vpack.c.b16 %v2694, %v2692
    %v2855 = vpack.c.b16 %v2695, %v2693
    %v2856 = vpack.c.b16 %v2698, %v2696
    %v2857 = vpack.c.b16 %v2699, %v2697
    %v2858 = vpack.c.b16 %v2702, %v2700
    %v2859 = vpack.c.b16 %v2703, %v2701
    %v2860 = vpack.c.b16 %v2706, %v2704
    %v2861 = vpack.c.b16 %v2707, %v2705
    %v2862 = vpack.c.b16 %v2710, %v2708
    %v2863 = vpack.c.b16 %v2711, %v2709
    %v2864 = vpack.c.b16 %v2714, %v2712
    %v2865 = vpack.c.b16 %v2715, %v2713
    %v2866 = vpack.c.b16 %v2718, %v2716
    %v2867 = vpack.c.b16 %v2719, %v2717
    %v2868 = vpack.c.b16 %v2722, %v2720
    %v2869 = vpack.c.b16 %v2723, %v2721
    %v2870 = vpack.c.b16 %v2726, %v2724
    %v2871 = vpack.c.b16 %v2727, %v2725
    %v2872 = vpack.c.b16 %v2730, %v2728
    %v2873 = vpack.c.b16 %v2731, %v2729
    %v2874 = vpack.c.b16 %v2734, %v2732
    %v2875 = vpack.c.b16 %v2735, %v2733
    %v2876 = vpack.c.b16 %v2738, %v2736
    %v2877 = vpack.c.b16 %v2739, %v2737
    %v2878 = vpack.c.b16 %v2742, %v2740
    %v2879 = vpack.c.b16 %v2743, %v2741
    %v2880 = vpack.c.b16 %v2746, %v2744
    %v2881 = vpack.c.b16 %v2747, %v2745
    %v2882 = vpack.c.b16 %v2750, %v2748
    %v2883 = vpack.c.b16 %v2751, %v2749
    %v2884 = vpack.c.b16 %v2754, %v2752
    %v2885 = vpack.c.b16 %v2755, %v2753
    %v2886 = vpack.c.b16 %v2758, %v2756
    %v2887 = vpack.c.b16 %v2759, %v2757
    %v2888 = vpack.c.b16 %v2762, %v2760
    %v2889 = vpack.c.b16 %v2763, %v2761
    %v2890 = vpack.c.b16 %v2766, %v2764
    %v2891 = vpack.c.b16 %v2767, %v2765
    %v2892 = vpack.c.b16 %v2770, %v2768
    %v2893 = vpack.c.b16 %v2771, %v2769
    %v2894 = vpack.c.b16 %v2774, %v2772
    %v2895 = vpack.c.b16 %v2775, %v2773
    %v2896 = vpack.c.b16 %v2778, %v2776
    %v2897 = vpack.c.b16 %v2779, %v2777
    %v2898 = vpack.c.b16 %v2782, %v2780
    %v2899 = vpack.c.b16 %v2783, %v2781
    %v2900 = vpack.c.b16 %v2786, %v2784
    %v2901 = vpack.c.b16 %v2787, %v2785
    %v2902 = vpack.c.b16 %v2790, %v2788
    %v2903 = vpack.c.b16 %v2791, %v2789
    %v2904 = vpack.c.b16 %v2794, %v2792
    %v2905 = vpack.c.b16 %v2795, %v2793
    %v2906 = vpack.c.b16 %v2798, %v2796
    %v2907 = vpack.c.b16 %v2799, %v2797
    %v2908 = vpack.c.b16 %v2802, %v2800
    %v2909 = vpack.c.b16 %v2803, %v2801
    %v2910 = vpack.c.b16 %v2806, %v2804
    %v2911 = vpack.c.b16 %v2807, %v2805
    %v2912 = vpack.c.b16 %v2810, %v2808
    %v2913 = vpack.c.b16 %v2811, %v2809
    %v2914 = vpack.c.b16 %v2814, %v2812
    %v2915 = vpack.c.b16 %v2815, %v2813
    %v2916 = vpack.c.b16 %v2818, %v2816
    %v2917 = vpack.c.b16 %v2819, %v2817
    %v2918 = vpack.c.b16 %v2822, %v2820
    %v2919 = vpack.c.b16 %v2823, %v2821
    %3016 = vmatprep.subr.bf16.mxu0 %v2839
    %3017 = vmatpush1.bf16.msra.mxu0 %v2838
    %3018 = vmatprep.subr.bf16.mxu0 %v2837
    %3019 = vmatpush1.bf16.msra.mxu0 %v2836
    %3020 = vmatprep.subr.bf16.mxu0 %v2835
    %3021 = vmatpush1.bf16.msra.mxu0 %v2834
    %3022 = vmatprep.subr.bf16.mxu0 %v2833
    %3023 = vmatpush1.bf16.msra.mxu0 %v2832
    %3024 = vmatprep.subr.bf16.mxu0 %v2831
    %3025 = vmatpush1.bf16.msra.mxu0 %v2830
    %3026 = vmatprep.subr.bf16.mxu0 %v2829
    %3027 = vmatpush1.bf16.msra.mxu0 %v2828
    %3028 = vmatprep.subr.bf16.mxu0 %v2827
    %3029 = vmatpush1.bf16.msra.mxu0 %v2826
    %3030 = vmatprep.subr.bf16.mxu0 %v2825
    %3031 = vmatpush1.bf16.msra.mxu0 %v2824
    %3032 = vmatprep.subr.bf16.mxu0 %v2855
    %3033 = vmatpush2.bf16.msra.mxu0 %v2854
    %3034 = vmatprep.subr.bf16.mxu0 %v2853
    %3035 = vmatpush2.bf16.msra.mxu0 %v2852
    %3036 = vmatprep.subr.bf16.mxu0 %v2851
    %3037 = vmatpush2.bf16.msra.mxu0 %v2850
    %3038 = vmatprep.subr.bf16.mxu0 %v2849
    %3039 = vmatpush2.bf16.msra.mxu0 %v2848
    %3040 = vmatprep.subr.bf16.mxu0 %v2847
    %3041 = vmatpush2.bf16.msra.mxu0 %v2846
    %3042 = vmatprep.subr.bf16.mxu0 %v2845
    %3043 = vmatpush2.bf16.msra.mxu0 %v2844
    %3044 = vmatprep.subr.bf16.mxu0 %v2843
    %3045 = vmatpush2.bf16.msra.mxu0 %v2842
    %3046 = vmatprep.subr.bf16.mxu0 %v2841
    %3047 = vmatpush2.bf16.msra.mxu0 %v2840
    %3048 = vmatprep.mubr.bf16.mxu0 %v2423
    %3049 = vmatmul.mubr.bf16.gmra.mxu0 %v2422
    %v3050 = vpop.f32.mrf.mxu0
    %v3051 = vadd.f32 %v2529, %v3050
    %v3052 = vpop.f32.mrf.mxu0
    %v3053 = vadd.f32 %v2533, %v3052
    %v3054 = vpop.f32.mrf.mxu0
    %v3055 = vpop.f32.mrf.mxu0
    %3056 = vdwg.mxu0
    %3057 = vmatprep.subr.bf16.mxu0 %v2871
    %3058 = vmatpush1.bf16.msra.mxu0 %v2870
    %3059 = vmatprep.subr.bf16.mxu0 %v2869
    %3060 = vmatpush1.bf16.msra.mxu0 %v2868
    %3061 = vmatprep.subr.bf16.mxu0 %v2867
    %3062 = vmatpush1.bf16.msra.mxu0 %v2866
    %3063 = vmatprep.subr.bf16.mxu0 %v2865
    %3064 = vmatpush1.bf16.msra.mxu0 %v2864
    %3065 = vmatprep.subr.bf16.mxu0 %v2863
    %3066 = vmatpush1.bf16.msra.mxu0 %v2862
    %3067 = vmatprep.subr.bf16.mxu0 %v2861
    %3068 = vmatpush1.bf16.msra.mxu0 %v2860
    %3069 = vmatprep.subr.bf16.mxu0 %v2859
    %3070 = vmatpush1.bf16.msra.mxu0 %v2858
    %3071 = vmatprep.subr.bf16.mxu0 %v2857
    %3072 = vmatpush1.bf16.msra.mxu0 %v2856
    %3073 = vmatprep.subr.bf16.mxu0 %v2887
    %3074 = vmatpush2.bf16.msra.mxu0 %v2886
    %3075 = vmatprep.subr.bf16.mxu0 %v2885
    %3076 = vmatpush2.bf16.msra.mxu0 %v2884
    %3077 = vmatprep.subr.bf16.mxu0 %v2883
    %3078 = vmatpush2.bf16.msra.mxu0 %v2882
    %3079 = vmatprep.subr.bf16.mxu0 %v2881
    %3080 = vmatpush2.bf16.msra.mxu0 %v2880
    %3081 = vmatprep.subr.bf16.mxu0 %v2879
    %3082 = vmatpush2.bf16.msra.mxu0 %v2878
    %3083 = vmatprep.subr.bf16.mxu0 %v2877
    %3084 = vmatpush2.bf16.msra.mxu0 %v2876
    %3085 = vmatprep.subr.bf16.mxu0 %v2875
    %3086 = vmatpush2.bf16.msra.mxu0 %v2874
    %3087 = vmatprep.subr.bf16.mxu0 %v2873
    %3088 = vmatpush2.bf16.msra.mxu0 %v2872
    %3089 = vmatprep.mubr.bf16.mxu0 %v2425
    %3090 = vmatmul.mubr.bf16.gmra.mxu0 %v2424
    %v3091 = vpop.f32.mrf.mxu0
    %v3092 = vadd.f32 %v3051, %v3091
    %v3093 = vpop.f32.mrf.mxu0
    %v3094 = vadd.f32 %v3053, %v3093
    %v3095 = vpop.f32.mrf.mxu0
    %v3096 = vpop.f32.mrf.mxu0
    %3097 = vdwg.mxu0
    %3098 = vmatprep.subr.bf16.mxu0 %v2903
    %3099 = vmatpush1.bf16.msra.mxu0 %v2902
    %3100 = vmatprep.subr.bf16.mxu0 %v2901
    %3101 = vmatpush1.bf16.msra.mxu0 %v2900
    %3102 = vmatprep.subr.bf16.mxu0 %v2899
    %3103 = vmatpush1.bf16.msra.mxu0 %v2898
    %3104 = vmatprep.subr.bf16.mxu0 %v2897
    %3105 = vmatpush1.bf16.msra.mxu0 %v2896
    %3106 = vmatprep.subr.bf16.mxu0 %v2895
    %3107 = vmatpush1.bf16.msra.mxu0 %v2894
    %3108 = vmatprep.subr.bf16.mxu0 %v2893
    %3109 = vmatpush1.bf16.msra.mxu0 %v2892
    %3110 = vmatprep.subr.bf16.mxu0 %v2891
    %3111 = vmatpush1.bf16.msra.mxu0 %v2890
    %3112 = vmatprep.subr.bf16.mxu0 %v2889
    %3113 = vmatpush1.bf16.msra.mxu0 %v2888
    %3114 = vmatprep.subr.bf16.mxu0 %v2919
    %3115 = vmatpush2.bf16.msra.mxu0 %v2918
    %3116 = vmatprep.subr.bf16.mxu0 %v2917
    %3117 = vmatpush2.bf16.msra.mxu0 %v2916
    %3118 = vmatprep.subr.bf16.mxu0 %v2915
    %3119 = vmatpush2.bf16.msra.mxu0 %v2914
    %3120 = vmatprep.subr.bf16.mxu0 %v2913
    %3121 = vmatpush2.bf16.msra.mxu0 %v2912
    %3122 = vmatprep.subr.bf16.mxu0 %v2911
    %3123 = vmatpush2.bf16.msra.mxu0 %v2910
    %3124 = vmatprep.subr.bf16.mxu0 %v2909
    %3125 = vmatpush2.bf16.msra.mxu0 %v2908
    %3126 = vmatprep.subr.bf16.mxu0 %v2907
    %3127 = vmatpush2.bf16.msra.mxu0 %v2906
    %3128 = vmatprep.subr.bf16.mxu0 %v2905
    %3129 = vmatpush2.bf16.msra.mxu0 %v2904
    %3130 = vmatprep.mubr.bf16.mxu0 %v2427
    %3131 = vmatmul.mubr.bf16.gmra.mxu0 %v2426
    %v3132 = vpop.f32.mrf.mxu0
    %v3133 = vadd.f32 %v3092, %v3132
    %v3134 = vpop.f32.mrf.mxu0
    %v3135 = vadd.f32 %v3094, %v3134
    %v3136 = vpop.f32.mrf.mxu0
    %v3137 = vpop.f32.mrf.mxu0
    %3138 = vdwg.mxu0
    %vm3139 = vcmp.gt.f32.partialorder %v3133, 0.0
    %vm3140 = vcmp.gt.f32.partialorder %v3135, 0.0
    %v3141 = vmul.f32 %v3133, 0.2
    %v3142 = vmul.f32 %v3135, 0.2
    %v3143 = vsel %vm3139, %v3133, %v3141
    %v3144 = vsel %vm3140, %v3135, %v3142
    %v3145 = vpack.c.bf16 %v3143, %v3143
    %v3146 = vpack.c.bf16 %v3144, %v3144
    %v3147 = vld [vmem:[#allocation12] sm:$0xf]
    %v3148 = vld [vmem:[#allocation12 + $0x4] sm:$0xf]
    %v3149 = vld [vmem:[#allocation12 + $0x8] sm:$0xf]
    %v3150 = vld [vmem:[#allocation12 + $0xc] sm:$0xf]
    %v3151 = vld [vmem:[#allocation12 + $0x10] sm:$0xf]
    %v3152 = vld [vmem:[#allocation12 + $0x14] sm:$0xf]
    %v3153 = vld [vmem:[#allocation12 + $0x18] sm:$0xf]
    %v3154 = vld [vmem:[#allocation12 + $0x1c] sm:$0xf]
    %v3155 = vld [vmem:[#allocation12 + $0x20] sm:$0xf]
    %v3156 = vld [vmem:[#allocation12 + $0x24] sm:$0xf]
    %v3157 = vld [vmem:[#allocation12 + $0x28] sm:$0xf]
    %v3158 = vld [vmem:[#allocation12 + $0x2c] sm:$0xf]
    %v3159 = vld [vmem:[#allocation12 + $0x30] sm:$0xf]
    %v3160 = vld [vmem:[#allocation12 + $0x34] sm:$0xf]
    %v3161 = vld [vmem:[#allocation12 + $0x38] sm:$0xf]
    %v3162 = vld [vmem:[#allocation12 + $0x3c] sm:$0xf]
    %v3163 = vld [vmem:[#allocation12 + $0x40] sm:$0xf]
    %v3164 = vld [vmem:[#allocation12 + $0x44] sm:$0xf]
    %v3165 = vld [vmem:[#allocation12 + $0x48] sm:$0xf]
    %v3166 = vld [vmem:[#allocation12 + $0x4c] sm:$0xf]
    %v3167 = vld [vmem:[#allocation12 + $0x50] sm:$0xf]
    %v3168 = vld [vmem:[#allocation12 + $0x54] sm:$0xf]
    %v3169 = vld [vmem:[#allocation12 + $0x58] sm:$0xf]
    %v3170 = vld [vmem:[#allocation12 + $0x5c] sm:$0xf]
    %v3171 = vld [vmem:[#allocation12 + $0x60] sm:$0xf]
    %v3172 = vld [vmem:[#allocation12 + $0x64] sm:$0xf]
    %v3173 = vld [vmem:[#allocation12 + $0x68] sm:$0xf]
    %v3174 = vld [vmem:[#allocation12 + $0x6c] sm:$0xf]
    %v3175 = vld [vmem:[#allocation12 + $0x70] sm:$0xf]
    %v3176 = vld [vmem:[#allocation12 + $0x74] sm:$0xf]
    %v3177 = vld [vmem:[#allocation12 + $0x78] sm:$0xf]
    %v3178 = vld [vmem:[#allocation12 + $0x7c] sm:$0xf]
    %v3179 = vld [vmem:[%s8] sm:$0x1]
    %v3181 = vlaneseq
    %v3182 = vshrl.u32 %v3181, 7
    %v3183 = vsub.s32 0, %v3182
    %v3184 = vrot.slane %v3179, %v3183
    %v3218 = vunpack.c.l.b16 %v3147
    %v3219 = vunpack.c.l.b16 %v3148
    %v3220 = vunpack.c.l.b16 %v3149
    %v3221 = vunpack.c.l.b16 %v3150
    %v3222 = vunpack.c.l.b16 %v3151
    %v3223 = vunpack.c.l.b16 %v3152
    %v3224 = vunpack.c.l.b16 %v3153
    %v3225 = vunpack.c.l.b16 %v3154
    %v3226 = vunpack.c.l.b16 %v3155
    %v3227 = vunpack.c.l.b16 %v3156
    %v3228 = vunpack.c.l.b16 %v3157
    %v3229 = vunpack.c.l.b16 %v3158
    %v3230 = vunpack.c.l.b16 %v3159
    %v3231 = vunpack.c.l.b16 %v3160
    %v3232 = vunpack.c.l.b16 %v3161
    %v3233 = vunpack.c.l.b16 %v3162
    %v3234 = vunpack.c.l.b16 %v3163
    %v3235 = vunpack.c.l.b16 %v3164
    %v3236 = vunpack.c.l.b16 %v3165
    %v3237 = vunpack.c.l.b16 %v3166
    %v3238 = vunpack.c.l.b16 %v3167
    %v3239 = vunpack.c.l.b16 %v3168
    %v3240 = vunpack.c.l.b16 %v3169
    %v3241 = vunpack.c.l.b16 %v3170
    %v3242 = vunpack.c.l.b16 %v3171
    %v3243 = vunpack.c.l.b16 %v3172
    %v3244 = vunpack.c.l.b16 %v3173
    %v3245 = vunpack.c.l.b16 %v3174
    %v3246 = vunpack.c.l.b16 %v3175
    %v3247 = vunpack.c.l.b16 %v3176
    %v3248 = vunpack.c.l.b16 %v3177
    %v3249 = vunpack.c.l.b16 %v3178
    %v3250 = vpack.c.b16 %v3219, %v3218
    %v3251 = vpack.c.b16 %v3221, %v3220
    %v3252 = vpack.c.b16 %v3223, %v3222
    %v3253 = vpack.c.b16 %v3225, %v3224
    %v3254 = vpack.c.b16 %v3227, %v3226
    %v3255 = vpack.c.b16 %v3229, %v3228
    %v3256 = vpack.c.b16 %v3231, %v3230
    %v3257 = vpack.c.b16 %v3233, %v3232
    %v3258 = vpack.c.b16 %v3235, %v3234
    %v3259 = vpack.c.b16 %v3237, %v3236
    %v3260 = vpack.c.b16 %v3239, %v3238
    %v3261 = vpack.c.b16 %v3241, %v3240
    %v3262 = vpack.c.b16 %v3243, %v3242
    %v3263 = vpack.c.b16 %v3245, %v3244
    %v3264 = vpack.c.b16 %v3247, %v3246
    %v3265 = vpack.c.b16 %v3249, %v3248
    %3282 = vmatprep.subr.bf16.mxu0 0
    %3283 = vmatpush1.bf16.msra.mxu0 %v3257
    %3284 = vmatprep.subr.bf16.mxu0 0
    %3285 = vmatpush1.bf16.msra.mxu0 %v3256
    %3286 = vmatprep.subr.bf16.mxu0 0
    %3287 = vmatpush1.bf16.msra.mxu0 %v3255
    %3288 = vmatprep.subr.bf16.mxu0 0
    %3289 = vmatpush1.bf16.msra.mxu0 %v3254
    %3290 = vmatprep.subr.bf16.mxu0 0
    %3291 = vmatpush1.bf16.msra.mxu0 %v3253
    %3292 = vmatprep.subr.bf16.mxu0 0
    %3293 = vmatpush1.bf16.msra.mxu0 %v3252
    %3294 = vmatprep.subr.bf16.mxu0 0
    %3295 = vmatpush1.bf16.msra.mxu0 %v3251
    %3296 = vmatprep.subr.bf16.mxu0 0
    %3297 = vmatpush1.bf16.msra.mxu0 %v3250
    %3298 = vmatprep.subr.bf16.mxu0 0
    %3299 = vmatpush2.bf16.msra.mxu0 %v3265
    %3300 = vmatprep.subr.bf16.mxu0 0
    %3301 = vmatpush2.bf16.msra.mxu0 %v3264
    %3302 = vmatprep.subr.bf16.mxu0 0
    %3303 = vmatpush2.bf16.msra.mxu0 %v3263
    %3304 = vmatprep.subr.bf16.mxu0 0
    %3305 = vmatpush2.bf16.msra.mxu0 %v3262
    %3306 = vmatprep.subr.bf16.mxu0 0
    %3307 = vmatpush2.bf16.msra.mxu0 %v3261
    %3308 = vmatprep.subr.bf16.mxu0 0
    %3309 = vmatpush2.bf16.msra.mxu0 %v3260
    %3310 = vmatprep.subr.bf16.mxu0 0
    %3311 = vmatpush2.bf16.msra.mxu0 %v3259
    %3312 = vmatprep.subr.bf16.mxu0 0
    %3313 = vmatpush2.bf16.msra.mxu0 %v3258
    %3314 = vmatprep.mubr.bf16.mxu0 %v3146
    %3315 = vmatmul.mubr.bf16.gmra.mxu0 %v3145
    %v3316 = vpop.f32.mrf.mxu0
    %v3317 = vadd.f32 %v3184, %v3316
    %v3318 = vpop.f32.mrf.mxu0
    %v3319 = vpop.f32.mrf.mxu0
    %v3320 = vpop.f32.mrf.mxu0
    %3321 = vdwg.mxu0
    %v3322 = vmax.f32 %v3317, 0.0
    %3323 = vst [vmem:[#allocation14] sm:$0xff] %v3322
    // Predicated region
    $region62: #{tpu_custom_call.1} parent=1 // pred_check
      _
    $region63: #{tpu_custom_call.1} parent=1 // pred_check_branch
      %3325 = sbr.rel (0) target = $region65
    $region64: #{tpu_custom_call.1} parent=1 // pred_region
      %s3327 = ssub.s32 128, 128
      %3328 = vsyncadd [#allocation5], %s3327
      %s3330 = sshll.u32 [#allocation14], 4
      %s3331 = int_to_ptr.vmem [resolvable:$true] %s3330
      %3333 = dma.vmem_to_hbm [thread:$0]  %s3331, 128, %s9, [#allocation5]
    $region65: #{tpu_custom_call.1} parent=1 // pred_fallthru
      _
    // Predicated region
    $region66: #{tpu_custom_call.1} parent=1 // pred_check
      _
    $region67: #{tpu_custom_call.1} parent=1 // pred_check_branch
      %3335 = sbr.rel (0) target = $region69
    $region68: #{tpu_custom_call.1} parent=1 // pred_region
      %3336 = dma.done [#allocation5], 128
    $region69: #{tpu_custom_call.1} parent=1 // pred_fallthru
      _
    %3337 = vsyncpa [#allocation4], 1
    %3338 = vsyncpa [#allocation7], 1
    %3339 = vsyncpa [#allocation10], 1
    %3340 = vsyncpa [#allocation13], 1
    %3341 = vsyncpa [#allocation5], 1

</llo_original>
